<compile_context>
chip_gen: v5e
topology: v5e:2x2
jax: 0.10.0
libtpu: 0.0.40
codegen_flags: <defaults>
</compile_context>

<pallas_src>
import math

import jax
import jax.numpy as jnp
from jax import lax
from jax.experimental import pallas as pl
from jax.experimental.pallas import tpu as pltpu  # noqa: F401  (TPU backend assumed)

# ----------------------- configuration (small, consistent shapes) -----------------------
B = 2                     # batch
D = 4                     # enc_in (channels)
SEQ_LEN = 24
PRED_LEN = 8
PATCH_LEN = 8             # depth_conv(kernel=8, stride=patch_len) forces patch_len == 8
STRIDE = 8
N_HEADS = 2               # patch_num % n_heads == 0
PAD = STRIDE              # padding_patch == 'end'
L = (SEQ_LEN - PATCH_LEN) // STRIDE + 1 + 1     # patch_num = 4
DM = PATCH_LEN * PATCH_LEN                      # d_model = 64
HID = PRED_LEN * 2                              # mlp hidden = 16
HD = L // N_HEADS                               # attention head dim = 2
KS = 8                                          # depth_conv kernel size
P_OUT = (DM - KS) // PATCH_LEN + 1              # conv output positions == 8
BD = B * D                                      # channel-independent rows = 8
NR = BD * P_OUT                                 # rows in the (b,d,pos) layout = 64
EPS = 1e-5
YW = PRED_LEN + 2 * L * P_OUT                   # fused patch-stage output width = 72

APPROX_RECIP = True       # softmax denominator via EUP approximate reciprocal

# ------------------------------ packed parameter slab layout ------------------------------
ROW_WC2 = 0          # (24, 72)  fused embed->{lin_res,depth_res,depth_conv}, pad folded in
ROW_W4 = 24          # (4, 20)   [W_pc^T | W_q^T | W_kv^T | W_pj^T]
ROW_EYE4 = 28        # (4, 4)
ROW_WF2 = 32         # (16, 8)
ROW_EYE8 = 48        # (8, 8)
ROW_RW = 56          # (8, 3)    per-(b,d) row: [rev_w, rev_b, 1/(rev_w+eps^2)]
ROW_VEC = 64         # (10, <=128) one small vector per row (see VEC_* below)
ROW_WB = 80          # (4, 128)  MLP fc1 rearranged
ROW_E = 88           # (64, 8)
ROW_M2 = 152         # (64, 64)
ROW_C2 = 216         # (64, 8)
ROW_M3 = 280         # (64, 128)
ROW_R = 344          # (8, 64)
ROW_CM = 352         # (128, 16)
ROW_NEG = 480        # (64, 64)  additive attention mask: 0 on (b,d) block, 1e9 off-block
N_ROWS = 544

VEC_BCOMB = 0        # (72)
VEC_BN_G = 1         # (4)
VEC_BN_B = 2         # (4)
VEC_B_PC = 3         # (4)
VEC_LN_G = 4         # (4)
VEC_LN_B = 5         # (4)
VEC_B_QKV = 6        # (12) = [b_q | b_kv]
VEC_B_PJ = 7         # (4)
VEC_B_F1 = 8         # (16)
VEC_B_F2 = 9         # (8)


def _gelu(x):
    # exact (erf) GELU, matching torch.nn.GELU default
    return 0.5 * x * (1.0 + lax.erf(x * 0.7071067811865476))


# ------------------------------------ fused Pallas kernel ------------------------------------
def patchlg_kernel(x_ref, p_ref, o_ref):
    f32 = jnp.float32
    dot = lambda a, b: jnp.dot(a, b, preferred_element_type=f32)
    NT = (((1,), (1,)), ((), ()))      # contract last dims: A @ B^T  (standard MXU form)

    def blk(row, nrows, ncols):
        return p_ref[row:row + nrows, 0:ncols]

    def vrow(i, n):
        return p_ref[ROW_VEC + i:ROW_VEC + i + 1, 0:n]

    eye4 = blk(ROW_EYE4, D, D)                              # (4, 4)
    eye8 = blk(ROW_EYE8, PRED_LEN, PRED_LEN)                # (8, 8)

    # ---------- input layout fold: (B, SEQ_LEN, D) -> rows (b,d), cols time ----------
    rows = [lax.dot_general(eye4, x_ref[b], NT, preferred_element_type=f32)   # (4, 24)
            for b in range(B)]
    xt = jnp.concatenate(rows, axis=0)                      # (BD, SEQ_LEN)

    rw = blk(ROW_RW, BD, 3)                                 # (8, 3)
    rev_w = rw[:, 0:1]
    rev_b = rw[:, 1:2]
    inv_w = rw[:, 2:3]

    # ---------------- RevIN 'norm' (per (b,d) row over time) ----------------
    mean = jnp.mean(xt, axis=-1, keepdims=True)             # (BD, 1)
    cent = xt - mean
    var = jnp.mean(cent * cent, axis=-1, keepdims=True)     # biased
    rstd = lax.rsqrt(var + EPS)
    std = (var + EPS) * rstd                                # == sqrt(var + eps)
    z = cent * rstd * rev_w + rev_b                         # (BD, 24)

    # ------- fused embed -> {lin_res, depth_res, depth_conv}: ONE matmul (pad folded) -------
    Y = dot(z, blk(ROW_WC2, SEQ_LEN, YW)) + vrow(VEC_BCOMB, YW)      # (BD, 72)
    z_res = Y[:, 0:PRED_LEN]                                         # (BD, 8)

    # ------- layout transition rows (b,d) -> rows (b,d,pos) via precomputed selectors -------
    Ytr = Y[:, PRED_LEN:]                                            # (BD, 64)
    E = blk(ROW_E, NR, BD)                                           # (64, 8)
    M2 = blk(ROW_M2, NR, 2 * L * P_OUT)                              # (64, 64)
    C2 = blk(ROW_C2, 2 * L * P_OUT, 2 * L)                           # (64, 8)
    T2 = dot(dot(E, Ytr) * M2, C2)                                   # (64, 8)
    res_t = T2[:, 0:L]                                               # depth_res
    zc_t = T2[:, L:2 * L]                                            # depth_conv

    # ------- Local_Relational_Block: GELU -> BatchNorm1d(patch_num) -> +res -> point conv -------
    zc_t = _gelu(zc_t)
    mu_bn = jnp.mean(zc_t, axis=0, keepdims=True)                    # stats over (batch, pos)
    var_bn = jnp.mean((zc_t - mu_bn) ** 2, axis=0, keepdims=True)
    zc_t = (zc_t - mu_bn) * lax.rsqrt(var_bn + EPS) * vrow(VEC_BN_G, L) + vrow(VEC_BN_B, L)
    zd_t = zc_t + res_t                                              # (64, 4)
    W4 = blk(ROW_W4, L, 5 * L)                                       # (4, 20)
    zpt_t = dot(zd_t, W4[:, 0:L]) + vrow(VEC_B_PC, L)                # point conv -> (64, 4)

    # ------- GLRBlock: LayerNorm(patch_num) + Global_Relational_Block + residual -------
    mu_ln = jnp.mean(zpt_t, axis=-1, keepdims=True)
    var_ln = jnp.mean((zpt_t - mu_ln) ** 2, axis=-1, keepdims=True)
    xn = (zpt_t - mu_ln) * lax.rsqrt(var_ln + EPS) * vrow(VEC_LN_G, L) + vrow(VEC_LN_B, L)

    qkv = dot(xn, W4[:, L:4 * L]) + vrow(VEC_B_QKV, 3 * L)           # (64, 12) = [q | k | v]
    neg = blk(ROW_NEG, NR, NR)                                       # (64, 64)
    scale = float(HD) ** -0.5

    head_outs = []
    for h in range(N_HEADS):
        qh = qkv[:, h * HD:(h + 1) * HD]                             # (64, 2)
        kh = qkv[:, L + h * HD:L + (h + 1) * HD]                     # (64, 2)
        vh = qkv[:, 2 * L + h * HD:2 * L + (h + 1) * HD]             # (64, 2)
        s = lax.dot_general(qh, kh, NT, preferred_element_type=f32) * scale - neg   # (64, 64)
        s = jnp.exp(s - jnp.max(s, axis=-1, keepdims=True))
        den = jnp.sum(s, axis=-1, keepdims=True)
        if APPROX_RECIP:
            p_att = s * pl.reciprocal(den, approx=True)
        else:
            p_att = s / den
        head_outs.append(dot(p_att, vh))                             # (64, 2)
    att_out = jnp.concatenate(head_outs, axis=-1)                    # (64, 4) head-major

    zg_t = zpt_t + dot(att_out, W4[:, 4 * L:5 * L]) + vrow(VEC_B_PJ, L)   # GLR residual

    # ------- Mlp on flattened (L, P) via masked matmuls with precomputed selectors -------
    V = dot(zg_t, blk(ROW_WB, L, P_OUT * HID))                       # (64, 128)
    V = V * blk(ROW_M3, NR, P_OUT * HID)
    h1 = dot(dot(blk(ROW_R, BD, NR), V), blk(ROW_CM, P_OUT * HID, HID)) + vrow(VEC_B_F1, HID)
    h1 = _gelu(h1)                                                   # (8, 16)
    z_mlp = dot(h1, blk(ROW_WF2, HID, PRED_LEN)) + vrow(VEC_B_F2, PRED_LEN)   # (8, 8)

    # ------- head sum + RevIN 'denorm' (per (b,d) row) -------
    y = z_res + z_mlp
    y = (y - rev_b) * inv_w
    y = y * std + mean                                               # (BD, PRED_LEN)

    # ---------- output layout fold: rows (b,d) -> (B, PRED_LEN, D) ----------
    for b in range(B):
        yb = y[b * D:(b + 1) * D, :]                                 # (4, 8)
        tb = lax.dot_general(eye8, yb, NT, preferred_element_type=f32)   # (8, 4) = yb^T
        o_ref[b, :, :] = tb


# --------------------------------- parameter packing ----------------------------------
def pack_params(p):
    f32 = jnp.float32
    eye = lambda n: jnp.eye(n, dtype=f32)

    # --- fused (embed -> {lin_res, depth_res, depth_conv}) weights in the flat [l,p] layout ---
    W_emb_big = jnp.kron(eye(L), p['W_e'].T)                          # (32, 256)
    b_e_big = jnp.tile(p['b_e'], L)                                   # (256,)

    Wres_T = p['W_res'].T                                             # (256, 8)
    W_dr_big = jnp.kron(eye(L), p['W_dr'].T)                          # (256, 32)
    b_dr_big = jnp.tile(p['b_dr'], L)                                 # (32,)

    blocks = jnp.stack([jnp.kron(eye(P_OUT), p['W_dc'][l].reshape(KS, 1))
                        for l in range(L)])                           # (L, 64, 8)
    W_dc_big = (eye(L)[:, None, :, None] * blocks[:, :, None, :]).reshape(L * DM, L * P_OUT)
    b_dc_big = jnp.repeat(p['b_dc'], P_OUT)                           # (32,)

    S_right = jnp.concatenate([Wres_T, W_dr_big, W_dc_big], axis=1)   # (256, 72)
    b_right = jnp.concatenate([p['b_res'], b_dr_big, b_dc_big])       # (72,)
    W_comb = W_emb_big @ S_right                                      # (32, 72)
    b_comb = b_e_big @ S_right + b_right                              # (72,)
    # fold the 'end' replication pad (8 replicated cols of t=23) into the time weights
    Wc2 = W_comb[:SEQ_LEN].at[SEQ_LEN - 1].add(jnp.sum(W_comb[SEQ_LEN:], axis=0))   # (24, 72)

    # --- GLR-phase right-multipliers in the (B*N, C) layout ---
    W4 = jnp.concatenate([p['W_pc'].T, p['W_q'].T, p['W_kv'].T, p['W_pj'].T], axis=1)  # (4, 20)

    # --- MLP fc1 rearranged for the masked-matmul flatten: WB[l, p*HID + j] = W_f1[j, l*8+p]
    WB = p['W_f1'].reshape(HID, L, P_OUT).transpose(1, 2, 0).reshape(L, P_OUT * HID)   # (4, 128)
    Wf2T = p['W_f2'].T                                                # (16, 8)

    # --- per-(b,d)-row RevIN columns ---
    rev_w_col = jnp.tile(p['rev_w'], B).reshape(BD, 1)
    rev_b_col = jnp.tile(p['rev_b'], B).reshape(BD, 1)
    inv_w_col = 1.0 / (rev_w_col + EPS * EPS)
    rw = jnp.concatenate([rev_w_col, rev_b_col, inv_w_col], axis=1).astype(f32)   # (8, 3)

    # --- precomputed layout-selector / mask constants (previously built in-kernel) ---
    r_nr = jnp.arange(NR)
    E = (r_nr[:, None] // P_OUT == jnp.arange(BD)[None, :]).astype(f32)               # (64, 8)
    M2 = (jnp.arange(2 * L * P_OUT)[None, :] % P_OUT == r_nr[:, None] % P_OUT).astype(f32)
    s_i = jnp.arange(2 * L * P_OUT)[:, None]
    c_i = jnp.arange(2 * L)[None, :]
    C2 = (c_i == (s_i // (L * P_OUT)) * L + (s_i % (L * P_OUT)) // P_OUT).astype(f32)  # (64, 8)
    M3 = (jnp.arange(P_OUT * HID)[None, :] // HID == r_nr[:, None] % P_OUT).astype(f32)
    R = (jnp.arange(NR)[None, :] // P_OUT == jnp.arange(BD)[:, None]).astype(f32)      # (8, 64)
    Cm = (jnp.arange(P_OUT * HID)[:, None] % HID == jnp.arange(HID)[None, :]).astype(f32)
    NEG = jnp.where(r_nr[:, None] // P_OUT == r_nr[None, :] // P_OUT, 0.0, 1e9).astype(f32)

    # --- single packed slab ---
    slab = jnp.zeros((N_ROWS, 128), f32)

    def put(s, row, mat):
        mat = jnp.asarray(mat, f32)
        if mat.ndim == 1:
            mat = mat[None, :]
        return s.at[row:row + mat.shape[0], 0:mat.shape[1]].set(mat)

    slab = put(slab, ROW_WC2, Wc2)
    slab = put(slab, ROW_W4, W4)
    slab = put(slab, ROW_EYE4, eye(D))
    slab = put(slab, ROW_WF2, Wf2T)
    slab = put(slab, ROW_EYE8, eye(PRED_LEN))
    slab = put(slab, ROW_RW, rw)
    slab = put(slab, ROW_VEC + VEC_BCOMB, b_comb)
    slab = put(slab, ROW_VEC + VEC_BN_G, p['bn_g'])
    slab = put(slab, ROW_VEC + VEC_BN_B, p['bn_b'])
    slab = put(slab, ROW_VEC + VEC_B_PC, p['b_pc'])
    slab = put(slab, ROW_VEC + VEC_LN_G, p['ln_g'])
    slab = put(slab, ROW_VEC + VEC_LN_B, p['ln_b'])
    slab = put(slab, ROW_VEC + VEC_B_QKV, jnp.concatenate([p['b_q'], p['b_kv']]))
    slab = put(slab, ROW_VEC + VEC_B_PJ, p['b_pj'])
    slab = put(slab, ROW_VEC + VEC_B_F1, p['b_f1'])
    slab = put(slab, ROW_VEC + VEC_B_F2, p['b_f2'])
    slab = put(slab, ROW_WB, WB)
    slab = put(slab, ROW_E, E)
    slab = put(slab, ROW_M2, M2)
    slab = put(slab, ROW_C2, C2)
    slab = put(slab, ROW_M3, M3)
    slab = put(slab, ROW_R, R)
    slab = put(slab, ROW_CM, Cm)
    slab = put(slab, ROW_NEG, NEG)
    return slab


# --------------------------------- pallas_call wrapper ----------------------------------
def model_forward(x, slab):
    # NO wrapper layout ops: x is consumed as (B, SEQ_LEN, D), output comes out as
    # (B, PRED_LEN, D) directly from the kernel.
    return pl.pallas_call(
        patchlg_kernel,
        out_shape=jax.ShapeDtypeStruct((B, PRED_LEN, D), jnp.float32),
    )(x, slab)


# ------------------------------------ parameter init -------------------------------------
def init_params(key):
    ks = jax.random.split(key, 10)
    n = lambda k, s, std: (std * jax.random.normal(k, s, jnp.float32))
    p = {
        'rev_w': jnp.ones((D,), jnp.float32),
        'rev_b': jnp.zeros((D,), jnp.float32),
        'W_e': n(ks[0], (DM, PATCH_LEN), 0.02), 'b_e': jnp.zeros((DM,), jnp.float32),
        'W_res': n(ks[1], (PRED_LEN, L * DM), 0.02), 'b_res': jnp.zeros((PRED_LEN,), jnp.float32),
        'W_dr': n(ks[2], (PATCH_LEN, DM), 0.02), 'b_dr': jnp.zeros((PATCH_LEN,), jnp.float32),
        'W_dc': n(ks[3], (L, KS), math.sqrt(2.0 / KS)), 'b_dc': jnp.zeros((L,), jnp.float32),
        'bn_g': jnp.ones((L,), jnp.float32), 'bn_b': jnp.zeros((L,), jnp.float32),
        'W_pc': n(ks[4], (L, L), math.sqrt(2.0 / L)), 'b_pc': jnp.zeros((L,), jnp.float32),
        'ln_g': jnp.ones((L,), jnp.float32), 'ln_b': jnp.zeros((L,), jnp.float32),
        'W_q': n(ks[5], (L, L), 0.02), 'b_q': jnp.zeros((L,), jnp.float32),
        'W_kv': n(ks[6], (2 * L, L), 0.02), 'b_kv': jnp.zeros((2 * L,), jnp.float32),
        'W_pj': n(ks[7], (L, L), 0.02), 'b_pj': jnp.zeros((L,), jnp.float32),
        'W_f1': n(ks[8], (HID, L * PATCH_LEN), 0.02), 'b_f1': jnp.zeros((HID,), jnp.float32),
        'W_f2': n(ks[9], (PRED_LEN, HID), 0.02), 'b_f2': jnp.zeros((PRED_LEN,), jnp.float32),
    }
    return p


# ----------------------- pure-JAX reference (direct PyTorch transcription) -----------------------
def reference_forward(x, p):
    lin = lambda t, w, b: t @ w.T + b
    mean = x.mean(1, keepdims=True)
    std = jnp.sqrt(x.var(1, keepdims=True) + EPS)
    z = (x - mean) / std * p['rev_w'] + p['rev_b']
    zt = jnp.transpose(z, (0, 2, 1))
    zt = jnp.concatenate([zt, jnp.repeat(zt[:, :, -1:], PAD, axis=-1)], axis=-1)
    idx = jnp.arange(L)[:, None] * STRIDE + jnp.arange(PATCH_LEN)[None, :]
    zp = zt[:, :, idx].reshape(BD, L, PATCH_LEN)
    e = lin(zp, p['W_e'], p['b_e'])
    z_res = lin(e.reshape(B, D, -1), p['W_res'], p['b_res'])
    res = lin(e, p['W_dr'], p['b_dr'])
    e4 = e.reshape(BD, L, P_OUT, KS)
    z_d = jnp.einsum('blpk,lk->blp', e4, p['W_dc']) + p['b_dc'][None, :, None]
    z_d = jax.nn.gelu(z_d, approximate=False)
    mu = z_d.mean(axis=(0, 2), keepdims=True)
    var = z_d.var(axis=(0, 2), keepdims=True)
    z_d = (z_d - mu) / jnp.sqrt(var + EPS) * p['bn_g'][None, :, None] + p['bn_b'][None, :, None]
    z_d = z_d + res
    z_pt = jnp.einsum('ij,bjp->bip', p['W_pc'], z_d) + p['b_pc'][None, :, None]
    xt = jnp.transpose(z_pt, (0, 2, 1))
    xn = (xt - xt.mean(-1, keepdims=True)) / jnp.sqrt(xt.var(-1, keepdims=True) + EPS)
    xn = xn * p['ln_g'] + p['ln_b']
    Bp, N, C = xn.shape
    q = lin(xn, p['W_q'], p['b_q']).reshape(Bp, N, N_HEADS, HD).transpose(0, 2, 1, 3)
    kv = lin(xn, p['W_kv'], p['b_kv']).reshape(Bp, N, 2, N_HEADS, HD).transpose(2, 0, 3, 1, 4)
    k, v = kv[0], kv[1]
    att = jnp.einsum('bhnd,bhmd->bhnm', q, k) * (HD ** -0.5)
    att = jax.nn.softmax(att, axis=-1)
    o = jnp.einsum('bhnm,bhmd->bhnd', att, v).transpose(0, 2, 1, 3).reshape(Bp, N, C)
    o = jnp.transpose(lin(o, p['W_pj'], p['b_pj']), (0, 2, 1))
    z_g = z_pt + o
    h = jax.nn.gelu(lin(z_g.reshape(B, D, -1), p['W_f1'], p['b_f1']), approximate=False)
    z_mlp = lin(h, p['W_f2'], p['b_f2'])
    y = jnp.transpose(z_res + z_mlp, (0, 2, 1))
    y = (y - p['rev_b']) / (p['rev_w'] + EPS * EPS)
    y = y * std + mean
    return y


# --------------------------------------------- main ---------------------------------------------
if __name__ == "__main__":
    key = jax.random.PRNGKey(0)
    kx, kp = jax.random.split(key)
    x = jax.random.normal(kx, (B, SEQ_LEN, D), jnp.float32)
    prm = init_params(kp)
    slab = pack_params(prm)            # one-time weight folding: everything in ONE (544,128) slab

    fwd = jax.jit(model_forward)
    out = jax.block_until_ready(fwd(x, slab))

    ref = reference_forward(x, prm)
    assert out.shape == (B, PRED_LEN, D), out.shape
    assert bool(jnp.all(jnp.isfinite(out)))
    max_err = float(jnp.max(jnp.abs(out - ref)))
    assert bool(jnp.allclose(out, ref, atol=1e-2, rtol=1e-2)), max_err
    print("KERNEL_OK")
</pallas_src>

<mosaic_0001>
module attributes {stable_mosaic.version = 11 : i64} {
  func.func @patchlg_kernel(%arg0: memref<2x24x4xf32, #tpu.memory_space<vmem>>, %arg1: memref<544x128xf32, #tpu.memory_space<vmem>>, %arg2: memref<2x8x4xf32, #tpu.memory_space<vmem>>) attributes {dimension_semantics = [], scalar_prefetch = 0 : i64, scratch_operands = 0 : i64, tpu.core_type = #tpu.core_type<tc>} {
    %c28 = arith.constant 28 : index
    %c0 = arith.constant 0 : index
    %0 = vector.load %arg1[%c28, %c0] : memref<544x128xf32, #tpu.memory_space<vmem>>, vector<4x4xf32>
    %c48 = arith.constant 48 : index
    %c0_0 = arith.constant 0 : index
    %1 = vector.load %arg1[%c48, %c0_0] : memref<544x128xf32, #tpu.memory_space<vmem>>, vector<8x8xf32>
    %c0_1 = arith.constant 0 : index
    %c0_2 = arith.constant 0 : index
    %c0_3 = arith.constant 0 : index
    %2 = vector.load %arg0[%c0_1, %c0_2, %c0_3] : memref<2x24x4xf32, #tpu.memory_space<vmem>>, vector<1x24x4xf32>
    %3 = vector.shape_cast %2 : vector<1x24x4xf32> to vector<24x4xf32>
    %cst = arith.constant dense<0.000000e+00> : vector<4x24xf32>
    %4 = tpu.matmul %0, %3, %cst {dimension_numbers = #tpu.dot_dimension_numbers<[1], [1], [0], [0], [0, 0, 1, 0], [], []>} : vector<4x4xf32>, vector<24x4xf32>, vector<4x24xf32> -> vector<4x24xf32>
    %c1 = arith.constant 1 : index
    %c0_4 = arith.constant 0 : index
    %c0_5 = arith.constant 0 : index
    %5 = vector.load %arg0[%c1, %c0_4, %c0_5] : memref<2x24x4xf32, #tpu.memory_space<vmem>>, vector<1x24x4xf32>
    %6 = vector.shape_cast %5 : vector<1x24x4xf32> to vector<24x4xf32>
    %cst_6 = arith.constant dense<0.000000e+00> : vector<4x24xf32>
    %7 = tpu.matmul %0, %6, %cst_6 {dimension_numbers = #tpu.dot_dimension_numbers<[1], [1], [0], [0], [0, 0, 1, 0], [], []>} : vector<4x4xf32>, vector<24x4xf32>, vector<4x24xf32> -> vector<4x24xf32>
    %8 = tpu.concatenate %4, %7 in 0 : vector<4x24xf32>, vector<4x24xf32> -> vector<8x24xf32>
    %c56 = arith.constant 56 : index
    %c0_7 = arith.constant 0 : index
    %9 = vector.load %arg1[%c56, %c0_7] : memref<544x128xf32, #tpu.memory_space<vmem>>, vector<8x3xf32>
    %10 = vector.extract_strided_slice %9 {offsets = [0, 0], sizes = [8, 1], strides = [1, 1]} : vector<8x3xf32> to vector<8x1xf32>
    %11 = vector.extract_strided_slice %9 {offsets = [0, 1], sizes = [8, 1], strides = [1, 1]} : vector<8x3xf32> to vector<8x1xf32>
    %12 = vector.extract_strided_slice %9 {offsets = [0, 2], sizes = [8, 1], strides = [1, 1]} : vector<8x3xf32> to vector<8x1xf32>
    %cst_8 = arith.constant dense<0.000000e+00> : vector<8xf32>
    %13 = vector.multi_reduction <add>, %8, %cst_8 [1] : vector<8x24xf32> to vector<8xf32>
    %14 = vector.shape_cast %13 : vector<8xf32> to vector<8x1xf32>
    %cst_9 = arith.constant 2.400000e+01 : f32
    %15 = vector.broadcast %cst_9 : f32 to vector<8x1xf32>
    %16 = arith.divf %14, %15 : vector<8x1xf32>
    %17 = vector.broadcast %16 : vector<8x1xf32> to vector<8x24xf32>
    %18 = arith.subf %8, %17 : vector<8x24xf32>
    %19 = arith.mulf %18, %18 : vector<8x24xf32>
    %cst_10 = arith.constant dense<0.000000e+00> : vector<8xf32>
    %20 = vector.multi_reduction <add>, %19, %cst_10 [1] : vector<8x24xf32> to vector<8xf32>
    %21 = vector.shape_cast %20 : vector<8xf32> to vector<8x1xf32>
    %cst_11 = arith.constant 2.400000e+01 : f32
    %22 = vector.broadcast %cst_11 : f32 to vector<8x1xf32>
    %23 = arith.divf %21, %22 : vector<8x1xf32>
    %cst_12 = arith.constant 9.99999974E-6 : f32
    %24 = vector.broadcast %cst_12 : f32 to vector<8x1xf32>
    %25 = arith.addf %23, %24 : vector<8x1xf32>
    %26 = math.rsqrt %25 : vector<8x1xf32>
    %cst_13 = arith.constant 9.99999974E-6 : f32
    %27 = vector.broadcast %cst_13 : f32 to vector<8x1xf32>
    %28 = arith.addf %23, %27 : vector<8x1xf32>
    %29 = arith.mulf %28, %26 : vector<8x1xf32>
    %30 = vector.broadcast %26 : vector<8x1xf32> to vector<8x24xf32>
    %31 = arith.mulf %18, %30 : vector<8x24xf32>
    %32 = vector.broadcast %10 : vector<8x1xf32> to vector<8x24xf32>
    %33 = arith.mulf %31, %32 : vector<8x24xf32>
    %34 = vector.broadcast %11 : vector<8x1xf32> to vector<8x24xf32>
    %35 = arith.addf %33, %34 : vector<8x24xf32>
    %c0_14 = arith.constant 0 : index
    %c0_15 = arith.constant 0 : index
    %36 = vector.load %arg1[%c0_14, %c0_15] : memref<544x128xf32, #tpu.memory_space<vmem>>, vector<24x72xf32>
    %cst_16 = arith.constant dense<0.000000e+00> : vector<8x72xf32>
    %37 = tpu.matmul %35, %36, %cst_16 {dimension_numbers = #tpu.dot_dimension_numbers<[1], [0], [0], [1], [0, 0, 1, 1], [], []>} : vector<8x24xf32>, vector<24x72xf32>, vector<8x72xf32> -> vector<8x72xf32>
    %c64 = arith.constant 64 : index
    %c0_17 = arith.constant 0 : index
    %38 = vector.load %arg1[%c64, %c0_17] : memref<544x128xf32, #tpu.memory_space<vmem>>, vector<1x72xf32>
    %39 = vector.broadcast %38 : vector<1x72xf32> to vector<8x72xf32>
    %40 = arith.addf %37, %39 : vector<8x72xf32>
    %41 = vector.extract_strided_slice %40 {offsets = [0, 0], sizes = [8, 8], strides = [1, 1]} : vector<8x72xf32> to vector<8x8xf32>
    %42 = vector.extract_strided_slice %40 {offsets = [0, 8], sizes = [8, 64], strides = [1, 1]} : vector<8x72xf32> to vector<8x64xf32>
    %c88 = arith.constant 88 : index
    %c0_18 = arith.constant 0 : index
    %43 = vector.load %arg1[%c88, %c0_18] : memref<544x128xf32, #tpu.memory_space<vmem>>, vector<64x8xf32>
    %c152 = arith.constant 152 : index
    %c0_19 = arith.constant 0 : index
    %44 = vector.load %arg1[%c152, %c0_19] : memref<544x128xf32, #tpu.memory_space<vmem>>, vector<64x64xf32>
    %c216 = arith.constant 216 : index
    %c0_20 = arith.constant 0 : index
    %45 = vector.load %arg1[%c216, %c0_20] : memref<544x128xf32, #tpu.memory_space<vmem>>, vector<64x8xf32>
    %cst_21 = arith.constant dense<0.000000e+00> : vector<64x64xf32>
    %46 = tpu.matmul %43, %42, %cst_21 {dimension_numbers = #tpu.dot_dimension_numbers<[1], [0], [0], [1], [0, 0, 1, 1], [], []>} : vector<64x8xf32>, vector<8x64xf32>, vector<64x64xf32> -> vector<64x64xf32>
    %47 = arith.mulf %46, %44 : vector<64x64xf32>
    %cst_22 = arith.constant dense<0.000000e+00> : vector<64x8xf32>
    %48 = tpu.matmul %47, %45, %cst_22 {dimension_numbers = #tpu.dot_dimension_numbers<[1], [0], [0], [1], [0, 0, 1, 1], [], []>} : vector<64x64xf32>, vector<64x8xf32>, vector<64x8xf32> -> vector<64x8xf32>
    %49 = vector.extract_strided_slice %48 {offsets = [0, 0], sizes = [64, 4], strides = [1, 1]} : vector<64x8xf32> to vector<64x4xf32>
    %50 = vector.extract_strided_slice %48 {offsets = [0, 4], sizes = [64, 4], strides = [1, 1]} : vector<64x8xf32> to vector<64x4xf32>
    %cst_23 = arith.constant 5.000000e-01 : f32
    %51 = vector.broadcast %cst_23 : f32 to vector<64x4xf32>
    %52 = arith.mulf %51, %50 : vector<64x4xf32>
    %cst_24 = arith.constant 0.707106769 : f32
    %53 = vector.broadcast %cst_24 : f32 to vector<64x4xf32>
    %54 = arith.mulf %50, %53 : vector<64x4xf32>
    %55 = math.erf %54 : vector<64x4xf32>
    %cst_25 = arith.constant 1.000000e+00 : f32
    %56 = vector.broadcast %cst_25 : f32 to vector<64x4xf32>
    %57 = arith.addf %56, %55 : vector<64x4xf32>
    %58 = arith.mulf %52, %57 : vector<64x4xf32>
    %cst_26 = arith.constant dense<0.000000e+00> : vector<4xf32>
    %59 = vector.multi_reduction <add>, %58, %cst_26 [0] : vector<64x4xf32> to vector<4xf32>
    %60 = vector.shape_cast %59 : vector<4xf32> to vector<1x4xf32>
    %cst_27 = arith.constant 6.400000e+01 : f32
    %61 = vector.broadcast %cst_27 : f32 to vector<1x4xf32>
    %62 = arith.divf %60, %61 : vector<1x4xf32>
    %63 = vector.broadcast %62 : vector<1x4xf32> to vector<64x4xf32>
    %64 = arith.subf %58, %63 : vector<64x4xf32>
    %65 = arith.mulf %64, %64 : vector<64x4xf32>
    %cst_28 = arith.constant dense<0.000000e+00> : vector<4xf32>
    %66 = vector.multi_reduction <add>, %65, %cst_28 [0] : vector<64x4xf32> to vector<4xf32>
    %67 = vector.shape_cast %66 : vector<4xf32> to vector<1x4xf32>
    %cst_29 = arith.constant 6.400000e+01 : f32
    %68 = vector.broadcast %cst_29 : f32 to vector<1x4xf32>
    %69 = arith.divf %67, %68 : vector<1x4xf32>
    %70 = vector.broadcast %62 : vector<1x4xf32> to vector<64x4xf32>
    %71 = arith.subf %58, %70 : vector<64x4xf32>
    %cst_30 = arith.constant 9.99999974E-6 : f32
    %72 = vector.broadcast %cst_30 : f32 to vector<1x4xf32>
    %73 = arith.addf %69, %72 : vector<1x4xf32>
    %74 = math.rsqrt %73 : vector<1x4xf32>
    %75 = vector.broadcast %74 : vector<1x4xf32> to vector<64x4xf32>
    %76 = arith.mulf %71, %75 : vector<64x4xf32>
    %c65 = arith.constant 65 : index
    %c0_31 = arith.constant 0 : index
    %77 = vector.load %arg1[%c65, %c0_31] : memref<544x128xf32, #tpu.memory_space<vmem>>, vector<1x4xf32>
    %78 = vector.broadcast %77 : vector<1x4xf32> to vector<64x4xf32>
    %79 = arith.mulf %76, %78 : vector<64x4xf32>
    %c66 = arith.constant 66 : index
    %c0_32 = arith.constant 0 : index
    %80 = vector.load %arg1[%c66, %c0_32] : memref<544x128xf32, #tpu.memory_space<vmem>>, vector<1x4xf32>
    %81 = vector.broadcast %80 : vector<1x4xf32> to vector<64x4xf32>
    %82 = arith.addf %79, %81 : vector<64x4xf32>
    %83 = arith.addf %82, %49 : vector<64x4xf32>
    %c24 = arith.constant 24 : index
    %c0_33 = arith.constant 0 : index
    %84 = vector.load %arg1[%c24, %c0_33] : memref<544x128xf32, #tpu.memory_space<vmem>>, vector<4x20xf32>
    %85 = vector.extract_strided_slice %84 {offsets = [0, 0], sizes = [4, 4], strides = [1, 1]} : vector<4x20xf32> to vector<4x4xf32>
    %cst_34 = arith.constant dense<0.000000e+00> : vector<64x4xf32>
    %86 = tpu.matmul %83, %85, %cst_34 {dimension_numbers = #tpu.dot_dimension_numbers<[1], [0], [0], [1], [0, 0, 1, 1], [], []>} : vector<64x4xf32>, vector<4x4xf32>, vector<64x4xf32> -> vector<64x4xf32>
    %c67 = arith.constant 67 : index
    %c0_35 = arith.constant 0 : index
    %87 = vector.load %arg1[%c67, %c0_35] : memref<544x128xf32, #tpu.memory_space<vmem>>, vector<1x4xf32>
    %88 = vector.broadcast %87 : vector<1x4xf32> to vector<64x4xf32>
    %89 = arith.addf %86, %88 : vector<64x4xf32>
    %cst_36 = arith.constant dense<0.000000e+00> : vector<64xf32>
    %90 = vector.multi_reduction <add>, %89, %cst_36 [1] : vector<64x4xf32> to vector<64xf32>
    %91 = vector.shape_cast %90 : vector<64xf32> to vector<64x1xf32>
    %cst_37 = arith.constant 4.000000e+00 : f32
    %92 = vector.broadcast %cst_37 : f32 to vector<64x1xf32>
    %93 = arith.divf %91, %92 : vector<64x1xf32>
    %94 = vector.broadcast %93 : vector<64x1xf32> to vector<64x4xf32>
    %95 = arith.subf %89, %94 : vector<64x4xf32>
    %96 = arith.mulf %95, %95 : vector<64x4xf32>
    %cst_38 = arith.constant dense<0.000000e+00> : vector<64xf32>
    %97 = vector.multi_reduction <add>, %96, %cst_38 [1] : vector<64x4xf32> to vector<64xf32>
    %98 = vector.shape_cast %97 : vector<64xf32> to vector<64x1xf32>
    %cst_39 = arith.constant 4.000000e+00 : f32
    %99 = vector.broadcast %cst_39 : f32 to vector<64x1xf32>
    %100 = arith.divf %98, %99 : vector<64x1xf32>
    %101 = vector.broadcast %93 : vector<64x1xf32> to vector<64x4xf32>
    %102 = arith.subf %89, %101 : vector<64x4xf32>
    %cst_40 = arith.constant 9.99999974E-6 : f32
    %103 = vector.broadcast %cst_40 : f32 to vector<64x1xf32>
    %104 = arith.addf %100, %103 : vector<64x1xf32>
    %105 = math.rsqrt %104 : vector<64x1xf32>
    %106 = vector.broadcast %105 : vector<64x1xf32> to vector<64x4xf32>
    %107 = arith.mulf %102, %106 : vector<64x4xf32>
    %c68 = arith.constant 68 : index
    %c0_41 = arith.constant 0 : index
    %108 = vector.load %arg1[%c68, %c0_41] : memref<544x128xf32, #tpu.memory_space<vmem>>, vector<1x4xf32>
    %109 = vector.broadcast %108 : vector<1x4xf32> to vector<64x4xf32>
    %110 = arith.mulf %107, %109 : vector<64x4xf32>
    %c69 = arith.constant 69 : index
    %c0_42 = arith.constant 0 : index
    %111 = vector.load %arg1[%c69, %c0_42] : memref<544x128xf32, #tpu.memory_space<vmem>>, vector<1x4xf32>
    %112 = vector.broadcast %111 : vector<1x4xf32> to vector<64x4xf32>
    %113 = arith.addf %110, %112 : vector<64x4xf32>
    %114 = vector.extract_strided_slice %84 {offsets = [0, 4], sizes = [4, 12], strides = [1, 1]} : vector<4x20xf32> to vector<4x12xf32>
    %cst_43 = arith.constant dense<0.000000e+00> : vector<64x12xf32>
    %115 = tpu.matmul %113, %114, %cst_43 {dimension_numbers = #tpu.dot_dimension_numbers<[1], [0], [0], [1], [0, 0, 1, 1], [], []>} : vector<64x4xf32>, vector<4x12xf32>, vector<64x12xf32> -> vector<64x12xf32>
    %c70 = arith.constant 70 : index
    %c0_44 = arith.constant 0 : index
    %116 = vector.load %arg1[%c70, %c0_44] : memref<544x128xf32, #tpu.memory_space<vmem>>, vector<1x12xf32>
    %117 = vector.broadcast %116 : vector<1x12xf32> to vector<64x12xf32>
    %118 = arith.addf %115, %117 : vector<64x12xf32>
    %c480 = arith.constant 480 : index
    %c0_45 = arith.constant 0 : index
    %119 = vector.load %arg1[%c480, %c0_45] : memref<544x128xf32, #tpu.memory_space<vmem>>, vector<64x64xf32>
    %120 = vector.extract_strided_slice %118 {offsets = [0, 0], sizes = [64, 2], strides = [1, 1]} : vector<64x12xf32> to vector<64x2xf32>
    %121 = vector.extract_strided_slice %118 {offsets = [0, 4], sizes = [64, 2], strides = [1, 1]} : vector<64x12xf32> to vector<64x2xf32>
    %122 = vector.extract_strided_slice %118 {offsets = [0, 8], sizes = [64, 2], strides = [1, 1]} : vector<64x12xf32> to vector<64x2xf32>
    %cst_46 = arith.constant dense<0.000000e+00> : vector<64x64xf32>
    %123 = tpu.matmul %120, %121, %cst_46 {dimension_numbers = #tpu.dot_dimension_numbers<[1], [1], [0], [0], [0, 0, 1, 0], [], []>} : vector<64x2xf32>, vector<64x2xf32>, vector<64x64xf32> -> vector<64x64xf32>
    %cst_47 = arith.constant 0.707106769 : f32
    %124 = vector.broadcast %cst_47 : f32 to vector<64x64xf32>
    %125 = arith.mulf %123, %124 : vector<64x64xf32>
    %126 = arith.subf %125, %119 : vector<64x64xf32>
    %cst_48 = arith.constant dense<0xFF800000> : vector<64xf32>
    %127 = vector.multi_reduction <maximumf>, %126, %cst_48 [1] : vector<64x64xf32> to vector<64xf32>
    %128 = vector.shape_cast %127 : vector<64xf32> to vector<64x1xf32>
    %129 = vector.broadcast %128 : vector<64x1xf32> to vector<64x64xf32>
    %130 = arith.subf %126, %129 : vector<64x64xf32>
    %131 = math.exp %130 : vector<64x64xf32>
    %cst_49 = arith.constant dense<0.000000e+00> : vector<64xf32>
    %132 = vector.multi_reduction <add>, %131, %cst_49 [1] : vector<64x64xf32> to vector<64xf32>
    %133 = vector.shape_cast %132 : vector<64xf32> to vector<64x1xf32>
    %134 = tpu.reciprocal %133 {approx = true} : vector<64x1xf32> -> vector<64x1xf32>
    %135 = vector.broadcast %134 : vector<64x1xf32> to vector<64x64xf32>
    %136 = arith.mulf %131, %135 : vector<64x64xf32>
    %cst_50 = arith.constant dense<0.000000e+00> : vector<64x2xf32>
    %137 = tpu.matmul %136, %122, %cst_50 {dimension_numbers = #tpu.dot_dimension_numbers<[1], [0], [0], [1], [0, 0, 1, 1], [], []>} : vector<64x64xf32>, vector<64x2xf32>, vector<64x2xf32> -> vector<64x2xf32>
    %138 = vector.extract_strided_slice %118 {offsets = [0, 2], sizes = [64, 2], strides = [1, 1]} : vector<64x12xf32> to vector<64x2xf32>
    %139 = vector.extract_strided_slice %118 {offsets = [0, 6], sizes = [64, 2], strides = [1, 1]} : vector<64x12xf32> to vector<64x2xf32>
    %140 = vector.extract_strided_slice %118 {offsets = [0, 10], sizes = [64, 2], strides = [1, 1]} : vector<64x12xf32> to vector<64x2xf32>
    %cst_51 = arith.constant dense<0.000000e+00> : vector<64x64xf32>
    %141 = tpu.matmul %138, %139, %cst_51 {dimension_numbers = #tpu.dot_dimension_numbers<[1], [1], [0], [0], [0, 0, 1, 0], [], []>} : vector<64x2xf32>, vector<64x2xf32>, vector<64x64xf32> -> vector<64x64xf32>
    %cst_52 = arith.constant 0.707106769 : f32
    %142 = vector.broadcast %cst_52 : f32 to vector<64x64xf32>
    %143 = arith.mulf %141, %142 : vector<64x64xf32>
    %144 = arith.subf %143, %119 : vector<64x64xf32>
    %cst_53 = arith.constant dense<0xFF800000> : vector<64xf32>
    %145 = vector.multi_reduction <maximumf>, %144, %cst_53 [1] : vector<64x64xf32> to vector<64xf32>
    %146 = vector.shape_cast %145 : vector<64xf32> to vector<64x1xf32>
    %147 = vector.broadcast %146 : vector<64x1xf32> to vector<64x64xf32>
    %148 = arith.subf %144, %147 : vector<64x64xf32>
    %149 = math.exp %148 : vector<64x64xf32>
    %cst_54 = arith.constant dense<0.000000e+00> : vector<64xf32>
    %150 = vector.multi_reduction <add>, %149, %cst_54 [1] : vector<64x64xf32> to vector<64xf32>
    %151 = vector.shape_cast %150 : vector<64xf32> to vector<64x1xf32>
    %152 = tpu.reciprocal %151 {approx = true} : vector<64x1xf32> -> vector<64x1xf32>
    %153 = vector.broadcast %152 : vector<64x1xf32> to vector<64x64xf32>
    %154 = arith.mulf %149, %153 : vector<64x64xf32>
    %cst_55 = arith.constant dense<0.000000e+00> : vector<64x2xf32>
    %155 = tpu.matmul %154, %140, %cst_55 {dimension_numbers = #tpu.dot_dimension_numbers<[1], [0], [0], [1], [0, 0, 1, 1], [], []>} : vector<64x64xf32>, vector<64x2xf32>, vector<64x2xf32> -> vector<64x2xf32>
    %156 = tpu.concatenate %137, %155 in 1 : vector<64x2xf32>, vector<64x2xf32> -> vector<64x4xf32>
    %157 = vector.extract_strided_slice %84 {offsets = [0, 16], sizes = [4, 4], strides = [1, 1]} : vector<4x20xf32> to vector<4x4xf32>
    %cst_56 = arith.constant dense<0.000000e+00> : vector<64x4xf32>
    %158 = tpu.matmul %156, %157, %cst_56 {dimension_numbers = #tpu.dot_dimension_numbers<[1], [0], [0], [1], [0, 0, 1, 1], [], []>} : vector<64x4xf32>, vector<4x4xf32>, vector<64x4xf32> -> vector<64x4xf32>
    %159 = arith.addf %89, %158 : vector<64x4xf32>
    %c71 = arith.constant 71 : index
    %c0_57 = arith.constant 0 : index
    %160 = vector.load %arg1[%c71, %c0_57] : memref<544x128xf32, #tpu.memory_space<vmem>>, vector<1x4xf32>
    %161 = vector.broadcast %160 : vector<1x4xf32> to vector<64x4xf32>
    %162 = arith.addf %159, %161 : vector<64x4xf32>
    %c80 = arith.constant 80 : index
    %c0_58 = arith.constant 0 : index
    %163 = vector.load %arg1[%c80, %c0_58] : memref<544x128xf32, #tpu.memory_space<vmem>>, vector<4x128xf32>
    %cst_59 = arith.constant dense<0.000000e+00> : vector<64x128xf32>
    %164 = tpu.matmul %162, %163, %cst_59 {dimension_numbers = #tpu.dot_dimension_numbers<[1], [0], [0], [1], [0, 0, 1, 1], [], []>} : vector<64x4xf32>, vector<4x128xf32>, vector<64x128xf32> -> vector<64x128xf32>
    %c280 = arith.constant 280 : index
    %c0_60 = arith.constant 0 : index
    %165 = vector.load %arg1[%c280, %c0_60] : memref<544x128xf32, #tpu.memory_space<vmem>>, vector<64x128xf32>
    %166 = arith.mulf %164, %165 : vector<64x128xf32>
    %c344 = arith.constant 344 : index
    %c0_61 = arith.constant 0 : index
    %167 = vector.load %arg1[%c344, %c0_61] : memref<544x128xf32, #tpu.memory_space<vmem>>, vector<8x64xf32>
    %cst_62 = arith.constant dense<0.000000e+00> : vector<8x128xf32>
    %168 = tpu.matmul %167, %166, %cst_62 {dimension_numbers = #tpu.dot_dimension_numbers<[1], [0], [0], [1], [0, 0, 1, 1], [], []>} : vector<8x64xf32>, vector<64x128xf32>, vector<8x128xf32> -> vector<8x128xf32>
    %c352 = arith.constant 352 : index
    %c0_63 = arith.constant 0 : index
    %169 = vector.load %arg1[%c352, %c0_63] : memref<544x128xf32, #tpu.memory_space<vmem>>, vector<128x16xf32>
    %cst_64 = arith.constant dense<0.000000e+00> : vector<8x16xf32>
    %170 = tpu.matmul %168, %169, %cst_64 {dimension_numbers = #tpu.dot_dimension_numbers<[1], [0], [0], [1], [0, 0, 1, 1], [], []>} : vector<8x128xf32>, vector<128x16xf32>, vector<8x16xf32> -> vector<8x16xf32>
    %c72 = arith.constant 72 : index
    %c0_65 = arith.constant 0 : index
    %171 = vector.load %arg1[%c72, %c0_65] : memref<544x128xf32, #tpu.memory_space<vmem>>, vector<1x16xf32>
    %172 = vector.broadcast %171 : vector<1x16xf32> to vector<8x16xf32>
    %173 = arith.addf %170, %172 : vector<8x16xf32>
    %cst_66 = arith.constant 5.000000e-01 : f32
    %174 = vector.broadcast %cst_66 : f32 to vector<8x16xf32>
    %175 = arith.mulf %174, %173 : vector<8x16xf32>
    %cst_67 = arith.constant 0.707106769 : f32
    %176 = vector.broadcast %cst_67 : f32 to vector<8x16xf32>
    %177 = arith.mulf %173, %176 : vector<8x16xf32>
    %178 = math.erf %177 : vector<8x16xf32>
    %cst_68 = arith.constant 1.000000e+00 : f32
    %179 = vector.broadcast %cst_68 : f32 to vector<8x16xf32>
    %180 = arith.addf %179, %178 : vector<8x16xf32>
    %181 = arith.mulf %175, %180 : vector<8x16xf32>
    %c32 = arith.constant 32 : index
    %c0_69 = arith.constant 0 : index
    %182 = vector.load %arg1[%c32, %c0_69] : memref<544x128xf32, #tpu.memory_space<vmem>>, vector<16x8xf32>
    %cst_70 = arith.constant dense<0.000000e+00> : vector<8x8xf32>
    %183 = tpu.matmul %181, %182, %cst_70 {dimension_numbers = #tpu.dot_dimension_numbers<[1], [0], [0], [1], [0, 0, 1, 1], [], []>} : vector<8x16xf32>, vector<16x8xf32>, vector<8x8xf32> -> vector<8x8xf32>
    %c73 = arith.constant 73 : index
    %c0_71 = arith.constant 0 : index
    %184 = vector.load %arg1[%c73, %c0_71] : memref<544x128xf32, #tpu.memory_space<vmem>>, vector<1x8xf32>
    %185 = vector.broadcast %184 : vector<1x8xf32> to vector<8x8xf32>
    %186 = arith.addf %183, %185 : vector<8x8xf32>
    %187 = arith.addf %41, %186 : vector<8x8xf32>
    %188 = vector.broadcast %11 : vector<8x1xf32> to vector<8x8xf32>
    %189 = arith.subf %187, %188 : vector<8x8xf32>
    %190 = vector.broadcast %12 : vector<8x1xf32> to vector<8x8xf32>
    %191 = arith.mulf %189, %190 : vector<8x8xf32>
    %192 = vector.broadcast %29 : vector<8x1xf32> to vector<8x8xf32>
    %193 = arith.mulf %191, %192 : vector<8x8xf32>
    %194 = vector.broadcast %16 : vector<8x1xf32> to vector<8x8xf32>
    %195 = arith.addf %193, %194 : vector<8x8xf32>
    %196 = vector.extract_strided_slice %195 {offsets = [0, 0], sizes = [4, 8], strides = [1, 1]} : vector<8x8xf32> to vector<4x8xf32>
    %cst_72 = arith.constant dense<0.000000e+00> : vector<8x4xf32>
    %197 = tpu.matmul %1, %196, %cst_72 {dimension_numbers = #tpu.dot_dimension_numbers<[1], [1], [0], [0], [0, 0, 1, 0], [], []>} : vector<8x8xf32>, vector<4x8xf32>, vector<8x4xf32> -> vector<8x4xf32>
    %c0_73 = arith.constant 0 : index
    %c0_74 = arith.constant 0 : index
    %c0_75 = arith.constant 0 : index
    %198 = vector.load %arg2[%c0_73, %c0_74, %c0_75] : memref<2x8x4xf32, #tpu.memory_space<vmem>>, vector<1x8x4xf32>
    %199 = vector.shape_cast %198 : vector<1x8x4xf32> to vector<8x4xf32>
    %200 = vector.shape_cast %197 : vector<8x4xf32> to vector<1x8x4xf32>
    tpu.vector_store %arg2[%c0_73, %c0_74, %c0_75], %200 {strides = array<i32>} : memref<2x8x4xf32, #tpu.memory_space<vmem>>, vector<1x8x4xf32>,
    %201 = vector.extract_strided_slice %195 {offsets = [4, 0], sizes = [4, 8], strides = [1, 1]} : vector<8x8xf32> to vector<4x8xf32>
    %cst_76 = arith.constant dense<0.000000e+00> : vector<8x4xf32>
    %202 = tpu.matmul %1, %201, %cst_76 {dimension_numbers = #tpu.dot_dimension_numbers<[1], [1], [0], [0], [0, 0, 1, 0], [], []>} : vector<8x8xf32>, vector<4x8xf32>, vector<8x4xf32> -> vector<8x4xf32>
    %c1_77 = arith.constant 1 : index
    %c0_78 = arith.constant 0 : index
    %c0_79 = arith.constant 0 : index
    %203 = vector.load %arg2[%c1_77, %c0_78, %c0_79] : memref<2x8x4xf32, #tpu.memory_space<vmem>>, vector<1x8x4xf32>
    %204 = vector.shape_cast %203 : vector<1x8x4xf32> to vector<8x4xf32>
    %205 = vector.shape_cast %202 : vector<8x4xf32> to vector<1x8x4xf32>
    tpu.vector_store %arg2[%c1_77, %c0_78, %c0_79], %205 {strides = array<i32>} : memref<2x8x4xf32, #tpu.memory_space<vmem>>, vector<1x8x4xf32>,
    return
  }
}

</mosaic_0001>

<llo_original>
// kernel: model_forward.1
$region0: #{model_forward.1}
  #allocation0 [shape = 'u32[]', space=smem, size = 0x4, offset = 0x4, fixed_abs, tag = 'smem constant byte address 0x4 - core index']
  #allocation1 [shape = 'u32[72,128]{1,0:T(1,128)}', space=vmem, size = 0x9000, scoped, tag = 'internal scratch']
  %s0 = inlined_call_operand.vmem [shape: f32[2,24,4], index: 0, kind: input, shape index: {}]
  %s1 = inlined_call_operand.hbm [shape: f32[544,128], index: 1, kind: input, shape index: {}]
  %s2 = inlined_call_operand.vmem [shape: f32[2,8,4], index: 2, kind: output, shape index: {}]
  %s3 = sld [smem:[#allocation0]]
  $region22: #{model_forward.1} parent=0
    _
  %s5 = ssub.s32 1, %s3
  %s6 = scalar_select 0, %s5, %s3
  $region1: #{model_forward.1} parent=0
    #allocation2 [shape = 'u8[278528]{0}', space=vmem, size = 0x44000, scoped, tag = 'input window, operand 1, single buffered']
    #allocation3 [shape = 's32[1]{0}', space=sflag, size = 0x4, scoped, tag = 'scoped memory for model_forward.1']
    %7 = vsyncpa [#allocation3], 0
    // Predicated region
    $region2: #{model_forward.1} parent=1 // pred_check
      _
    $region3: #{model_forward.1} parent=1 // pred_check_branch
      %9 = sbr.rel (0) target = $region5
    $region4: #{model_forward.1} parent=1 // pred_region
      _
    $region5: #{model_forward.1} parent=1 // pred_fallthru
      _
    // Predicated region
    $region6: #{model_forward.1} parent=1 // pred_check
      _
    $region7: #{model_forward.1} parent=1 // pred_check_branch
      %11 = sbr.rel (0) target = $region9
    $region8: #{model_forward.1} parent=1 // pred_region
      %13 = vsyncadd [#allocation3], 0
      %s14 = sshll.u32 %s1, 4
      %s15 = int_to_ptr.hbm [resolvable:$true] %s14
      %s16 = sshll.u32 [#allocation2], 4
      %s17 = int_to_ptr.vmem [resolvable:$true] %s16
      %22 = dma.hbm_to_vmem [thread:$0]  %s15, 8704, %s17, [#allocation3], 128, 128, 8
    $region9: #{model_forward.1} parent=1 // pred_fallthru
      _
    // Predicated region
    $region10: #{model_forward.1} parent=1 // pred_check
      _
    $region11: #{model_forward.1} parent=1 // pred_check_branch
      %24 = sbr.rel (0) target = $region13
    $region12: #{model_forward.1} parent=1 // pred_region
      %26 = dma.done [#allocation3], 8704
    $region13: #{model_forward.1} parent=1 // pred_fallthru
      _
    %v27 = vld [vmem:[#allocation2 + $0x1c] sm:$0xf]
    %v28 = vld [vmem:[#allocation2 + $0x30] sm:$0xff]
    %v29 = vld [vmem:[%s0] sm:$0xff]
    %v30 = vld [vmem:[%s0 + $0x8] sm:$0xff]
    %v31 = vld [vmem:[%s0 + $0x10] sm:$0xff]
    %vm32 = vcmask 31744
    %v34 = vsel %vm32, %v27, 0
    %v37 = vsel %vm32, %v29, 0
    %v40 = vsel %vm32, %v30, 0
    %v43 = vsel %vm32, %v31, 0
    %45 = vmatpush.xpose.msra.mxu0 0.0
    %46 = vmatpush.xpose.msra.mxu0 0.0
    %47 = vmatpush.xpose.msra.mxu0 0.0
    %48 = vmatpush.xpose.msra.mxu0 0.0
    %49 = vmatpush.xpose.msra.mxu0 0.0
    %50 = vmatpush.xpose.msra.mxu0 0.0
    %51 = vmatpush.xpose.msra.mxu0 0.0
    %52 = vmatpush.xpose.msra.mxu0 0.0
    %53 = vmatpush.xpose.msra.mxu0 0.0
    %54 = vmatpush.xpose.msra.mxu0 0.0
    %55 = vmatpush.xpose.msra.mxu0 0.0
    %56 = vmatpush.xpose.msra.mxu0 0.0
    %57 = vmatpush.xpose.msra.mxu0 0.0
    %58 = vmatpush.xpose.msra.mxu0 %v43
    %59 = vmatpush.xpose.msra.mxu0 %v40
    %60 = vmatpush.xpose.msra.mxu0 %v37
    %61 = vmatmul.f32.gmra.mxu0 %v34
    %v62 = vpop.f32.mrf.mxu0
    %v63 = vadd.f32 0.0, %v62
    %64 = vdwg.mxu0
    %s65 = scalar_lea.vmem %s0, 24
    %v66 = vld [vmem:[%s65] sm:$0xff]
    %v67 = vld [vmem:[%s65 + $0x8] sm:$0xff]
    %v68 = vld [vmem:[%s65 + $0x10] sm:$0xff]
    %v70 = vsel %vm32, %v66, 0
    %v73 = vsel %vm32, %v67, 0
    %v76 = vsel %vm32, %v68, 0
    %78 = vmatpush.xpose.msra.mxu0 0.0
    %79 = vmatpush.xpose.msra.mxu0 0.0
    %80 = vmatpush.xpose.msra.mxu0 0.0
    %81 = vmatpush.xpose.msra.mxu0 0.0
    %82 = vmatpush.xpose.msra.mxu0 0.0
    %83 = vmatpush.xpose.msra.mxu0 0.0
    %84 = vmatpush.xpose.msra.mxu0 0.0
    %85 = vmatpush.xpose.msra.mxu0 0.0
    %86 = vmatpush.xpose.msra.mxu0 0.0
    %87 = vmatpush.xpose.msra.mxu0 0.0
    %88 = vmatpush.xpose.msra.mxu0 0.0
    %89 = vmatpush.xpose.msra.mxu0 0.0
    %90 = vmatpush.xpose.msra.mxu0 0.0
    %91 = vmatpush.xpose.msra.mxu0 %v76
    %92 = vmatpush.xpose.msra.mxu0 %v73
    %93 = vmatpush.xpose.msra.mxu0 %v70
    %94 = vmatmul.f32.gmra.mxu0 %v34
    %v95 = vpop.f32.mrf.mxu0
    %v96 = vadd.f32 0.0, %v95
    %97 = vdwg.mxu0
    %v99 = vrot.slane %v96, 4
    %vm101 = vcmask 1043456
    %v102 = vsel %vm101, %v63, %v99
    %v103 = vld [vmem:[#allocation2 + $0x38] sm:$0xff]
    %vm104 = vcmask 195584
    %v105 = vsel %vm104, %v102, 0.0
    %106 = vadd.xlane.f32.xlu0 %v105
    %v107 = vpop.xlane.xlu0 %106
    %v108 = vrcp.pop 24.0
    %v109 = vmul.f32 24.0, %v108
    %v110 = vsub.f32 1.0, %v109
    %v111 = vmul.f32 %v108, %v110
    %v112 = vadd.f32 %v108, %v111
    %vm113 = vweird.f32 %v108
    %v114 = vsel %vm113, %v108, %v112
    %v115 = vmul.f32 %v107, %v114
    %v116 = vsub.f32 %v102, %v115
    %v117 = vmul.f32 %v116, %v116
    %v118 = vsel %vm104, %v117, 0.0
    %119 = vadd.xlane.f32.xlu0 %v118
    %v120 = vpop.xlane.xlu0 %119
    %v121 = vmul.f32 %v120, %v114
    %v122 = vadd.f32 %v121, 1e-05
    %v123 = vrsqrt.pop %v122
    %v124 = vmul.f32 %v123, %v122
    %v125 = vmul.f32 %v124, %v123
    %v126 = vmul.f32 0.5, %v125
    %v127 = vsub.f32 1.5, %v126
    %v128 = vmul.f32 %v123, %v127
    %vm129 = vweird.f32 %v122
    %vm130 = vweird.f32 %v123
    %vm131 = vmor %vm129, %vm130
    %v132 = vsel %vm131, %v123, %v128
    %v133 = vmul.f32 %v122, %v132
    %v134 = vmul.f32 %v116, %v132
    %136 = vset.pattern.permute.xlu0 0
    %137 = vperm.xlu0 %136, %v103
    %v138 = vpop.permute.xlu0 %137
    %v140 = vmul.f32 %v134, %v138
    %141 = vset.pattern.permute.xlu0 1
    %142 = vperm.xlu0 %141, %v103
    %v143 = vpop.permute.xlu0 %142
    %v145 = vadd.f32 %v140, %v143
    %v146 = vld [vmem:[#allocation2] sm:$0xff]
    %v147 = vld [vmem:[#allocation2 + $0x8] sm:$0xff]
    %v148 = vld [vmem:[#allocation2 + $0x10] sm:$0xff]
    %v149 = vld [vmem:[#allocation2 + $0x40] sm:$0x1]
    %v150 = vperm.slane %v149, 0
    %v152 = vsel %vm104, %v145, 0
    %154 = vmatpush.msra.mxu0 0.0
    %155 = vmatpush.msra.mxu0 0.0
    %156 = vmatpush.msra.mxu0 0.0
    %157 = vmatpush.msra.mxu0 0.0
    %158 = vmatpush.msra.mxu0 0.0
    %159 = vmatpush.msra.mxu0 0.0
    %160 = vmatpush.msra.mxu0 0.0
    %161 = vmatpush.msra.mxu0 0.0
    %162 = vmatpush.msra.mxu0 0.0
    %163 = vmatpush.msra.mxu0 0.0
    %164 = vmatpush.msra.mxu0 0.0
    %165 = vmatpush.msra.mxu0 0.0
    %166 = vmatpush.msra.mxu0 0.0
    %167 = vmatpush.msra.mxu0 %v148
    %168 = vmatpush.msra.mxu0 %v147
    %169 = vmatpush.msra.mxu0 %v146
    %170 = vmatmul.f32.gmra.mxu0 %v152
    %v171 = vpop.f32.mrf.mxu0
    %v172 = vadd.f32 %v150, %v171
    %173 = vdwg.mxu0
    %v174 = vld [vmem:[#allocation2 + $0x58] sm:$0xff]
    %v175 = vld [vmem:[#allocation2 + $0x60] sm:$0xff]
    %v176 = vld [vmem:[#allocation2 + $0x68] sm:$0xff]
    %v177 = vld [vmem:[#allocation2 + $0x70] sm:$0xff]
    %v178 = vld [vmem:[#allocation2 + $0x78] sm:$0xff]
    %v179 = vld [vmem:[#allocation2 + $0x80] sm:$0xff]
    %v180 = vld [vmem:[#allocation2 + $0x88] sm:$0xff]
    %v181 = vld [vmem:[#allocation2 + $0x90] sm:$0xff]
    %v182 = vld [vmem:[#allocation2 + $0x98] sm:$0xff]
    %v183 = vld [vmem:[#allocation2 + $0xa0] sm:$0xff]
    %v184 = vld [vmem:[#allocation2 + $0xa8] sm:$0xff]
    %v185 = vld [vmem:[#allocation2 + $0xb0] sm:$0xff]
    %v186 = vld [vmem:[#allocation2 + $0xb8] sm:$0xff]
    %v187 = vld [vmem:[#allocation2 + $0xc0] sm:$0xff]
    %v188 = vld [vmem:[#allocation2 + $0xc8] sm:$0xff]
    %v189 = vld [vmem:[#allocation2 + $0xd0] sm:$0xff]
    %v190 = vld [vmem:[#allocation2 + $0xd8] sm:$0xff]
    %v191 = vld [vmem:[#allocation2 + $0xe0] sm:$0xff]
    %v192 = vld [vmem:[#allocation2 + $0xe8] sm:$0xff]
    %v193 = vld [vmem:[#allocation2 + $0xf0] sm:$0xff]
    %v194 = vld [vmem:[#allocation2 + $0xf8] sm:$0xff]
    %v195 = vld [vmem:[#allocation2 + $0x100] sm:$0xff]
    %v196 = vld [vmem:[#allocation2 + $0x108] sm:$0xff]
    %v197 = vld [vmem:[#allocation2 + $0x110] sm:$0xff]
    %199 = vrot.lane.b32.xlu0 %v172, 120
    %v200 = vpop.permute.xlu0 %199
    %vm202 = vcmask 64512
    %v204 = vsel %vm202, %v174, 0
    %v207 = vsel %vm202, %v175, 0
    %v210 = vsel %vm202, %v176, 0
    %v213 = vsel %vm202, %v177, 0
    %v216 = vsel %vm202, %v178, 0
    %v219 = vsel %vm202, %v179, 0
    %v222 = vsel %vm202, %v180, 0
    %v225 = vsel %vm202, %v181, 0
    %227 = vmatpush.msra.mxu0 0.0
    %228 = vmatpush.msra.mxu0 0.0
    %229 = vmatpush.msra.mxu0 0.0
    %230 = vmatpush.msra.mxu0 0.0
    %231 = vmatpush.msra.mxu0 0.0
    %232 = vmatpush.msra.mxu0 0.0
    %233 = vmatpush.msra.mxu0 0.0
    %234 = vmatpush.msra.mxu0 0.0
    %235 = vmatpush.msra.mxu0 0.0
    %236 = vmatpush.msra.mxu0 0.0
    %237 = vmatpush.msra.mxu0 0.0
    %238 = vmatpush.msra.mxu0 0.0
    %239 = vmatpush.msra.mxu0 0.0
    %240 = vmatpush.msra.mxu0 0.0
    %241 = vmatpush.msra.mxu0 0.0
    %242 = vmatpush.msra.mxu0 %v200
    %243 = vmatmul.f32.gmra.mxu0 %v204
    %v244 = vpop.f32.mrf.mxu0
    %v245 = vadd.f32 0.0, %v244
    %246 = vmatmul.f32.gmra.mxu0 %v207
    %v247 = vpop.f32.mrf.mxu0
    %v248 = vadd.f32 0.0, %v247
    %249 = vmatmul.f32.gmra.mxu0 %v210
    %v250 = vpop.f32.mrf.mxu0
    %v251 = vadd.f32 0.0, %v250
    %252 = vmatmul.f32.gmra.mxu0 %v213
    %v253 = vpop.f32.mrf.mxu0
    %v254 = vadd.f32 0.0, %v253
    %255 = vmatmul.f32.gmra.mxu0 %v216
    %v256 = vpop.f32.mrf.mxu0
    %v257 = vadd.f32 0.0, %v256
    %258 = vmatmul.f32.gmra.mxu0 %v219
    %v259 = vpop.f32.mrf.mxu0
    %v260 = vadd.f32 0.0, %v259
    %261 = vmatmul.f32.gmra.mxu0 %v222
    %v262 = vpop.f32.mrf.mxu0
    %v263 = vadd.f32 0.0, %v262
    %264 = vmatmul.f32.gmra.mxu0 %v225
    %v265 = vpop.f32.mrf.mxu0
    %v266 = vadd.f32 0.0, %v265
    %267 = vdwg.mxu0
    %v268 = vmul.f32 %v245, %v182
    %v269 = vmul.f32 %v248, %v183
    %v270 = vmul.f32 %v251, %v184
    %v271 = vmul.f32 %v254, %v185
    %v272 = vmul.f32 %v257, %v186
    %v273 = vmul.f32 %v260, %v187
    %v274 = vmul.f32 %v263, %v188
    %v275 = vmul.f32 %v266, %v189
    %vm276 = vcmask 523264
    %v278 = vsel %vm276, %v268, 0
    %v281 = vsel %vm276, %v269, 0
    %v284 = vsel %vm276, %v270, 0
    %v287 = vsel %vm276, %v271, 0
    %v290 = vsel %vm276, %v272, 0
    %v293 = vsel %vm276, %v273, 0
    %v296 = vsel %vm276, %v274, 0
    %v299 = vsel %vm276, %v275, 0
    %301 = vmatpush.msra.mxu0 0.0
    %302 = vmatpush.msra.mxu0 0.0
    %303 = vmatpush.msra.mxu0 0.0
    %304 = vmatpush.msra.mxu0 0.0
    %305 = vmatpush.msra.mxu0 0.0
    %306 = vmatpush.msra.mxu0 0.0
    %307 = vmatpush.msra.mxu0 0.0
    %308 = vmatpush.msra.mxu0 0.0
    %309 = vmatpush.msra.mxu0 %v197
    %310 = vmatpush.msra.mxu0 %v196
    %311 = vmatpush.msra.mxu0 %v195
    %312 = vmatpush.msra.mxu0 %v194
    %313 = vmatpush.msra.mxu0 %v193
    %314 = vmatpush.msra.mxu0 %v192
    %315 = vmatpush.msra.mxu0 %v191
    %316 = vmatpush.msra.mxu0 %v190
    %317 = vmatmul.f32.gmra.mxu0 %v278
    %v318 = vpop.f32.mrf.mxu0
    %v319 = vadd.f32 0.0, %v318
    %320 = vmatmul.f32.gmra.mxu0 %v281
    %v321 = vpop.f32.mrf.mxu0
    %v322 = vadd.f32 0.0, %v321
    %323 = vmatmul.f32.gmra.mxu0 %v284
    %v324 = vpop.f32.mrf.mxu0
    %v325 = vadd.f32 0.0, %v324
    %326 = vmatmul.f32.gmra.mxu0 %v287
    %v327 = vpop.f32.mrf.mxu0
    %v328 = vadd.f32 0.0, %v327
    %329 = vmatmul.f32.gmra.mxu0 %v290
    %v330 = vpop.f32.mrf.mxu0
    %v331 = vadd.f32 0.0, %v330
    %332 = vmatmul.f32.gmra.mxu0 %v293
    %v333 = vpop.f32.mrf.mxu0
    %v334 = vadd.f32 0.0, %v333
    %335 = vmatmul.f32.gmra.mxu0 %v296
    %v336 = vpop.f32.mrf.mxu0
    %v337 = vadd.f32 0.0, %v336
    %338 = vmatmul.f32.gmra.mxu0 %v299
    %v339 = vpop.f32.mrf.mxu0
    %v340 = vadd.f32 0.0, %v339
    %341 = vdwg.mxu0
    %v342 = vmul.f32 %v319, 0.5
    %v343 = vmul.f32 %v322, 0.5
    %v344 = vmul.f32 %v325, 0.5
    %v345 = vmul.f32 %v328, 0.5
    %v346 = vmul.f32 %v331, 0.5
    %v347 = vmul.f32 %v334, 0.5
    %v348 = vmul.f32 %v337, 0.5
    %v349 = vmul.f32 %v340, 0.5
    %v350 = vmul.f32 %v319, 0.70710677
    %v351 = vmul.f32 %v322, 0.70710677
    %v352 = vmul.f32 %v325, 0.70710677
    %v353 = vmul.f32 %v328, 0.70710677
    %v354 = vmul.f32 %v331, 0.70710677
    %v355 = vmul.f32 %v334, 0.70710677
    %v356 = vmul.f32 %v337, 0.70710677
    %v357 = vmul.f32 %v340, 0.70710677
    %v358 = vmul.f32 %v350, %v350
    %v359 = vmin.f32 16.0, %v358
    %v360 = vmul.f32 %v359, 2.1237322e-06
    %v361 = vadd.f32 %v360, 0.00028619796
    %v362 = vmul.f32 %v359, %v361
    %v363 = vadd.f32 %v362, 0.0036580483
    %v364 = vmul.f32 %v359, %v363
    %v365 = vadd.f32 %v364, 0.05243302
    %v366 = vmul.f32 %v359, %v365
    %v367 = vadd.f32 %v366, 0.18741608
    %v368 = vmul.f32 %v359, %v367
    %v369 = vadd.f32 %v368, 1.1283791
    %v370 = vmul.f32 %v350, %v369
    %v371 = vmul.f32 %v359, 3.8918573e-05
    %v372 = vadd.f32 %v371, 0.001143296
    %v373 = vmul.f32 %v359, %v372
    %v374 = vadd.f32 %v373, 0.014752088
    %v375 = vmul.f32 %v359, %v374
    %v376 = vadd.f32 %v375, 0.112945676
    %v377 = vmul.f32 %v359, %v376
    %v378 = vadd.f32 %v377, 0.4994258
    %v379 = vmul.f32 %v359, %v378
    %v380 = vadd.f32 %v379, 1.0
    %v381 = vrcp.pop %v380
    %v382 = vmul.f32 %v380, %v381
    %v383 = vsub.f32 1.0, %v382
    %v384 = vmul.f32 %v381, %v383
    %v385 = vadd.f32 %v381, %v384
    %vm386 = vweird.f32 %v380
    %vm387 = vweird.f32 %v381
    %vm388 = vmor %vm386, %vm387
    %v389 = vsel %vm388, %v381, %v385
    %v390 = vand.u32 2147483647, %v380
    %vm391 = vcmp.eq.f32.partialorder %v390, 8.507059e+37
    %v392 = vand.u32 %v380, 2147483648
    %v393 = vor.u32 1.1754944e-38, %v392
    %v394 = vsel %vm391, %v393, %v389
    %v395 = vmul.f32 %v370, %v394
    %v396 = vmin.f32 %v395, 1.0
    %v397 = vmax.f32 %v396, -1.0
    %v398 = vmul.f32 %v351, %v351
    %v399 = vmin.f32 16.0, %v398
    %v400 = vmul.f32 %v399, 2.1237322e-06
    %v401 = vadd.f32 %v400, 0.00028619796
    %v402 = vmul.f32 %v399, %v401
    %v403 = vadd.f32 %v402, 0.0036580483
    %v404 = vmul.f32 %v399, %v403
    %v405 = vadd.f32 %v404, 0.05243302
    %v406 = vmul.f32 %v399, %v405
    %v407 = vadd.f32 %v406, 0.18741608
    %v408 = vmul.f32 %v399, %v407
    %v409 = vadd.f32 %v408, 1.1283791
    %v410 = vmul.f32 %v351, %v409
    %v411 = vmul.f32 %v399, 3.8918573e-05
    %v412 = vadd.f32 %v411, 0.001143296
    %v413 = vmul.f32 %v399, %v412
    %v414 = vadd.f32 %v413, 0.014752088
    %v415 = vmul.f32 %v399, %v414
    %v416 = vadd.f32 %v415, 0.112945676
    %v417 = vmul.f32 %v399, %v416
    %v418 = vadd.f32 %v417, 0.4994258
    %v419 = vmul.f32 %v399, %v418
    %v420 = vadd.f32 %v419, 1.0
    %v421 = vrcp.pop %v420
    %v422 = vmul.f32 %v420, %v421
    %v423 = vsub.f32 1.0, %v422
    %v424 = vmul.f32 %v421, %v423
    %v425 = vadd.f32 %v421, %v424
    %vm426 = vweird.f32 %v420
    %vm427 = vweird.f32 %v421
    %vm428 = vmor %vm426, %vm427
    %v429 = vsel %vm428, %v421, %v425
    %v430 = vand.u32 2147483647, %v420
    %vm431 = vcmp.eq.f32.partialorder %v430, 8.507059e+37
    %v432 = vand.u32 %v420, 2147483648
    %v433 = vor.u32 1.1754944e-38, %v432
    %v434 = vsel %vm431, %v433, %v429
    %v435 = vmul.f32 %v410, %v434
    %v436 = vmin.f32 %v435, 1.0
    %v437 = vmax.f32 %v436, -1.0
    %v438 = vmul.f32 %v352, %v352
    %v439 = vmin.f32 16.0, %v438
    %v440 = vmul.f32 %v439, 2.1237322e-06
    %v441 = vadd.f32 %v440, 0.00028619796
    %v442 = vmul.f32 %v439, %v441
    %v443 = vadd.f32 %v442, 0.0036580483
    %v444 = vmul.f32 %v439, %v443
    %v445 = vadd.f32 %v444, 0.05243302
    %v446 = vmul.f32 %v439, %v445
    %v447 = vadd.f32 %v446, 0.18741608
    %v448 = vmul.f32 %v439, %v447
    %v449 = vadd.f32 %v448, 1.1283791
    %v450 = vmul.f32 %v352, %v449
    %v451 = vmul.f32 %v439, 3.8918573e-05
    %v452 = vadd.f32 %v451, 0.001143296
    %v453 = vmul.f32 %v439, %v452
    %v454 = vadd.f32 %v453, 0.014752088
    %v455 = vmul.f32 %v439, %v454
    %v456 = vadd.f32 %v455, 0.112945676
    %v457 = vmul.f32 %v439, %v456
    %v458 = vadd.f32 %v457, 0.4994258
    %v459 = vmul.f32 %v439, %v458
    %v460 = vadd.f32 %v459, 1.0
    %v461 = vrcp.pop %v460
    %v462 = vmul.f32 %v460, %v461
    %v463 = vsub.f32 1.0, %v462
    %v464 = vmul.f32 %v461, %v463
    %v465 = vadd.f32 %v461, %v464
    %vm466 = vweird.f32 %v460
    %vm467 = vweird.f32 %v461
    %vm468 = vmor %vm466, %vm467
    %v469 = vsel %vm468, %v461, %v465
    %v470 = vand.u32 2147483647, %v460
    %vm471 = vcmp.eq.f32.partialorder %v470, 8.507059e+37
    %v472 = vand.u32 %v460, 2147483648
    %v473 = vor.u32 1.1754944e-38, %v472
    %v474 = vsel %vm471, %v473, %v469
    %v475 = vmul.f32 %v450, %v474
    %v476 = vmin.f32 %v475, 1.0
    %v477 = vmax.f32 %v476, -1.0
    %v478 = vmul.f32 %v353, %v353
    %v479 = vmin.f32 16.0, %v478
    %v480 = vmul.f32 %v479, 2.1237322e-06
    %v481 = vadd.f32 %v480, 0.00028619796
    %v482 = vmul.f32 %v479, %v481
    %v483 = vadd.f32 %v482, 0.0036580483
    %v484 = vmul.f32 %v479, %v483
    %v485 = vadd.f32 %v484, 0.05243302
    %v486 = vmul.f32 %v479, %v485
    %v487 = vadd.f32 %v486, 0.18741608
    %v488 = vmul.f32 %v479, %v487
    %v489 = vadd.f32 %v488, 1.1283791
    %v490 = vmul.f32 %v353, %v489
    %v491 = vmul.f32 %v479, 3.8918573e-05
    %v492 = vadd.f32 %v491, 0.001143296
    %v493 = vmul.f32 %v479, %v492
    %v494 = vadd.f32 %v493, 0.014752088
    %v495 = vmul.f32 %v479, %v494
    %v496 = vadd.f32 %v495, 0.112945676
    %v497 = vmul.f32 %v479, %v496
    %v498 = vadd.f32 %v497, 0.4994258
    %v499 = vmul.f32 %v479, %v498
    %v500 = vadd.f32 %v499, 1.0
    %v501 = vrcp.pop %v500
    %v502 = vmul.f32 %v500, %v501
    %v503 = vsub.f32 1.0, %v502
    %v504 = vmul.f32 %v501, %v503
    %v505 = vadd.f32 %v501, %v504
    %vm506 = vweird.f32 %v500
    %vm507 = vweird.f32 %v501
    %vm508 = vmor %vm506, %vm507
    %v509 = vsel %vm508, %v501, %v505
    %v510 = vand.u32 2147483647, %v500
    %vm511 = vcmp.eq.f32.partialorder %v510, 8.507059e+37
    %v512 = vand.u32 %v500, 2147483648
    %v513 = vor.u32 1.1754944e-38, %v512
    %v514 = vsel %vm511, %v513, %v509
    %v515 = vmul.f32 %v490, %v514
    %v516 = vmin.f32 %v515, 1.0
    %v517 = vmax.f32 %v516, -1.0
    %v518 = vmul.f32 %v354, %v354
    %v519 = vmin.f32 16.0, %v518
    %v520 = vmul.f32 %v519, 2.1237322e-06
    %v521 = vadd.f32 %v520, 0.00028619796
    %v522 = vmul.f32 %v519, %v521
    %v523 = vadd.f32 %v522, 0.0036580483
    %v524 = vmul.f32 %v519, %v523
    %v525 = vadd.f32 %v524, 0.05243302
    %v526 = vmul.f32 %v519, %v525
    %v527 = vadd.f32 %v526, 0.18741608
    %v528 = vmul.f32 %v519, %v527
    %v529 = vadd.f32 %v528, 1.1283791
    %v530 = vmul.f32 %v354, %v529
    %v531 = vmul.f32 %v519, 3.8918573e-05
    %v532 = vadd.f32 %v531, 0.001143296
    %v533 = vmul.f32 %v519, %v532
    %v534 = vadd.f32 %v533, 0.014752088
    %v535 = vmul.f32 %v519, %v534
    %v536 = vadd.f32 %v535, 0.112945676
    %v537 = vmul.f32 %v519, %v536
    %v538 = vadd.f32 %v537, 0.4994258
    %v539 = vmul.f32 %v519, %v538
    %v540 = vadd.f32 %v539, 1.0
    %v541 = vrcp.pop %v540
    %v542 = vmul.f32 %v540, %v541
    %v543 = vsub.f32 1.0, %v542
    %v544 = vmul.f32 %v541, %v543
    %v545 = vadd.f32 %v541, %v544
    %vm546 = vweird.f32 %v540
    %vm547 = vweird.f32 %v541
    %vm548 = vmor %vm546, %vm547
    %v549 = vsel %vm548, %v541, %v545
    %v550 = vand.u32 2147483647, %v540
    %vm551 = vcmp.eq.f32.partialorder %v550, 8.507059e+37
    %v552 = vand.u32 %v540, 2147483648
    %v553 = vor.u32 1.1754944e-38, %v552
    %v554 = vsel %vm551, %v553, %v549
    %v555 = vmul.f32 %v530, %v554
    %v556 = vmin.f32 %v555, 1.0
    %v557 = vmax.f32 %v556, -1.0
    %v558 = vmul.f32 %v355, %v355
    %v559 = vmin.f32 16.0, %v558
    %v560 = vmul.f32 %v559, 2.1237322e-06
    %v561 = vadd.f32 %v560, 0.00028619796
    %v562 = vmul.f32 %v559, %v561
    %v563 = vadd.f32 %v562, 0.0036580483
    %v564 = vmul.f32 %v559, %v563
    %v565 = vadd.f32 %v564, 0.05243302
    %v566 = vmul.f32 %v559, %v565
    %v567 = vadd.f32 %v566, 0.18741608
    %v568 = vmul.f32 %v559, %v567
    %v569 = vadd.f32 %v568, 1.1283791
    %v570 = vmul.f32 %v355, %v569
    %v571 = vmul.f32 %v559, 3.8918573e-05
    %v572 = vadd.f32 %v571, 0.001143296
    %v573 = vmul.f32 %v559, %v572
    %v574 = vadd.f32 %v573, 0.014752088
    %v575 = vmul.f32 %v559, %v574
    %v576 = vadd.f32 %v575, 0.112945676
    %v577 = vmul.f32 %v559, %v576
    %v578 = vadd.f32 %v577, 0.4994258
    %v579 = vmul.f32 %v559, %v578
    %v580 = vadd.f32 %v579, 1.0
    %v581 = vrcp.pop %v580
    %v582 = vmul.f32 %v580, %v581
    %v583 = vsub.f32 1.0, %v582
    %v584 = vmul.f32 %v581, %v583
    %v585 = vadd.f32 %v581, %v584
    %vm586 = vweird.f32 %v580
    %vm587 = vweird.f32 %v581
    %vm588 = vmor %vm586, %vm587
    %v589 = vsel %vm588, %v581, %v585
    %v590 = vand.u32 2147483647, %v580
    %vm591 = vcmp.eq.f32.partialorder %v590, 8.507059e+37
    %v592 = vand.u32 %v580, 2147483648
    %v593 = vor.u32 1.1754944e-38, %v592
    %v594 = vsel %vm591, %v593, %v589
    %v595 = vmul.f32 %v570, %v594
    %v596 = vmin.f32 %v595, 1.0
    %v597 = vmax.f32 %v596, -1.0
    %v598 = vmul.f32 %v356, %v356
    %v599 = vmin.f32 16.0, %v598
    %v600 = vmul.f32 %v599, 2.1237322e-06
    %v601 = vadd.f32 %v600, 0.00028619796
    %v602 = vmul.f32 %v599, %v601
    %v603 = vadd.f32 %v602, 0.0036580483
    %v604 = vmul.f32 %v599, %v603
    %v605 = vadd.f32 %v604, 0.05243302
    %v606 = vmul.f32 %v599, %v605
    %v607 = vadd.f32 %v606, 0.18741608
    %v608 = vmul.f32 %v599, %v607
    %v609 = vadd.f32 %v608, 1.1283791
    %v610 = vmul.f32 %v356, %v609
    %v611 = vmul.f32 %v599, 3.8918573e-05
    %v612 = vadd.f32 %v611, 0.001143296
    %v613 = vmul.f32 %v599, %v612
    %v614 = vadd.f32 %v613, 0.014752088
    %v615 = vmul.f32 %v599, %v614
    %v616 = vadd.f32 %v615, 0.112945676
    %v617 = vmul.f32 %v599, %v616
    %v618 = vadd.f32 %v617, 0.4994258
    %v619 = vmul.f32 %v599, %v618
    %v620 = vadd.f32 %v619, 1.0
    %v621 = vrcp.pop %v620
    %v622 = vmul.f32 %v620, %v621
    %v623 = vsub.f32 1.0, %v622
    %v624 = vmul.f32 %v621, %v623
    %v625 = vadd.f32 %v621, %v624
    %vm626 = vweird.f32 %v620
    %vm627 = vweird.f32 %v621
    %vm628 = vmor %vm626, %vm627
    %v629 = vsel %vm628, %v621, %v625
    %v630 = vand.u32 2147483647, %v620
    %vm631 = vcmp.eq.f32.partialorder %v630, 8.507059e+37
    %v632 = vand.u32 %v620, 2147483648
    %v633 = vor.u32 1.1754944e-38, %v632
    %v634 = vsel %vm631, %v633, %v629
    %v635 = vmul.f32 %v610, %v634
    %v636 = vmin.f32 %v635, 1.0
    %v637 = vmax.f32 %v636, -1.0
    %v638 = vmul.f32 %v357, %v357
    %v639 = vmin.f32 16.0, %v638
    %v640 = vmul.f32 %v639, 2.1237322e-06
    %v641 = vadd.f32 %v640, 0.00028619796
    %v642 = vmul.f32 %v639, %v641
    %v643 = vadd.f32 %v642, 0.0036580483
    %v644 = vmul.f32 %v639, %v643
    %v645 = vadd.f32 %v644, 0.05243302
    %v646 = vmul.f32 %v639, %v645
    %v647 = vadd.f32 %v646, 0.18741608
    %v648 = vmul.f32 %v639, %v647
    %v649 = vadd.f32 %v648, 1.1283791
    %v650 = vmul.f32 %v357, %v649
    %v651 = vmul.f32 %v639, 3.8918573e-05
    %v652 = vadd.f32 %v651, 0.001143296
    %v653 = vmul.f32 %v639, %v652
    %v654 = vadd.f32 %v653, 0.014752088
    %v655 = vmul.f32 %v639, %v654
    %v656 = vadd.f32 %v655, 0.112945676
    %v657 = vmul.f32 %v639, %v656
    %v658 = vadd.f32 %v657, 0.4994258
    %v659 = vmul.f32 %v639, %v658
    %v660 = vadd.f32 %v659, 1.0
    %v661 = vrcp.pop %v660
    %v662 = vmul.f32 %v660, %v661
    %v663 = vsub.f32 1.0, %v662
    %v664 = vmul.f32 %v661, %v663
    %v665 = vadd.f32 %v661, %v664
    %vm666 = vweird.f32 %v660
    %vm667 = vweird.f32 %v661
    %vm668 = vmor %vm666, %vm667
    %v669 = vsel %vm668, %v661, %v665
    %v670 = vand.u32 2147483647, %v660
    %vm671 = vcmp.eq.f32.partialorder %v670, 8.507059e+37
    %v672 = vand.u32 %v660, 2147483648
    %v673 = vor.u32 1.1754944e-38, %v672
    %v674 = vsel %vm671, %v673, %v669
    %v675 = vmul.f32 %v650, %v674
    %v676 = vmin.f32 %v675, 1.0
    %v677 = vmax.f32 %v676, -1.0
    %v678 = vadd.f32 %v397, 1.0
    %v679 = vadd.f32 %v437, 1.0
    %v680 = vadd.f32 %v477, 1.0
    %v681 = vadd.f32 %v517, 1.0
    %v682 = vadd.f32 %v557, 1.0
    %v683 = vadd.f32 %v597, 1.0
    %v684 = vadd.f32 %v637, 1.0
    %v685 = vadd.f32 %v677, 1.0
    %v686 = vmul.f32 %v342, %v678
    %v687 = vmul.f32 %v343, %v679
    %v688 = vmul.f32 %v344, %v680
    %v689 = vmul.f32 %v345, %v681
    %v690 = vmul.f32 %v346, %v682
    %v691 = vmul.f32 %v347, %v683
    %v692 = vmul.f32 %v348, %v684
    %v693 = vmul.f32 %v349, %v685
    %vm694 = vcmask 64544
    %v695 = vsel %vm694, %v686, 0.0
    %v696 = vsel %vm694, %v687, 0.0
    %v697 = vadd.f32 %v695, %v696
    %v698 = vsel %vm694, %v688, 0.0
    %v699 = vadd.f32 %v697, %v698
    %v700 = vsel %vm694, %v689, 0.0
    %v701 = vadd.f32 %v699, %v700
    %v702 = vsel %vm694, %v690, 0.0
    %v703 = vadd.f32 %v701, %v702
    %v704 = vsel %vm694, %v691, 0.0
    %v705 = vadd.f32 %v703, %v704
    %v706 = vsel %vm694, %v692, 0.0
    %v707 = vadd.f32 %v705, %v706
    %v708 = vsel %vm694, %v693, 0.0
    %v709 = vadd.f32 %v707, %v708
    %v710 = vrot.slane %v709, 4
    %v711 = vadd.f32 %v709, %v710
    %v712 = vrot.slane %v711, 2
    %v713 = vadd.f32 %v711, %v712
    %v714 = vrot.slane %v713, 1
    %v715 = vadd.f32 %v713, %v714
    %v716 = vrcp.pop 64.0
    %v717 = vmul.f32 64.0, %v716
    %v718 = vsub.f32 1.0, %v717
    %v719 = vmul.f32 %v716, %v718
    %v720 = vadd.f32 %v716, %v719
    %vm721 = vweird.f32 %v716
    %v722 = vsel %vm721, %v716, %v720
    %v723 = vmul.f32 %v715, %v722
    %v724 = vsub.f32 %v686, %v723
    %v725 = vsub.f32 %v687, %v723
    %v726 = vsub.f32 %v688, %v723
    %v727 = vsub.f32 %v689, %v723
    %v728 = vsub.f32 %v690, %v723
    %v729 = vsub.f32 %v691, %v723
    %v730 = vsub.f32 %v692, %v723
    %v731 = vsub.f32 %v693, %v723
    %v732 = vmul.f32 %v724, %v724
    %v733 = vmul.f32 %v725, %v725
    %v734 = vmul.f32 %v726, %v726
    %v735 = vmul.f32 %v727, %v727
    %v736 = vmul.f32 %v728, %v728
    %v737 = vmul.f32 %v729, %v729
    %v738 = vmul.f32 %v730, %v730
    %v739 = vmul.f32 %v731, %v731
    %v740 = vsel %vm694, %v732, 0.0
    %v741 = vsel %vm694, %v733, 0.0
    %v742 = vadd.f32 %v740, %v741
    %v743 = vsel %vm694, %v734, 0.0
    %v744 = vadd.f32 %v742, %v743
    %v745 = vsel %vm694, %v735, 0.0
    %v746 = vadd.f32 %v744, %v745
    %v747 = vsel %vm694, %v736, 0.0
    %v748 = vadd.f32 %v746, %v747
    %v749 = vsel %vm694, %v737, 0.0
    %v750 = vadd.f32 %v748, %v749
    %v751 = vsel %vm694, %v738, 0.0
    %v752 = vadd.f32 %v750, %v751
    %v753 = vsel %vm694, %v739, 0.0
    %v754 = vadd.f32 %v752, %v753
    %v755 = vrot.slane %v754, 4
    %v756 = vadd.f32 %v754, %v755
    %v757 = vrot.slane %v756, 2
    %v758 = vadd.f32 %v756, %v757
    %v759 = vrot.slane %v758, 1
    %v760 = vadd.f32 %v758, %v759
    %v761 = vmul.f32 %v760, %v722
    %v762 = vadd.f32 %v761, 1e-05
    %v763 = vrsqrt.pop %v762
    %v764 = vmul.f32 %v763, %v762
    %v765 = vmul.f32 %v764, %v763
    %v766 = vmul.f32 0.5, %v765
    %v767 = vsub.f32 1.5, %v766
    %v768 = vmul.f32 %v763, %v767
    %vm769 = vweird.f32 %v762
    %vm770 = vweird.f32 %v763
    %vm771 = vmor %vm769, %vm770
    %v772 = vsel %vm771, %v763, %v768
    %v773 = vmul.f32 %v724, %v772
    %v774 = vmul.f32 %v725, %v772
    %v775 = vmul.f32 %v726, %v772
    %v776 = vmul.f32 %v727, %v772
    %v777 = vmul.f32 %v728, %v772
    %v778 = vmul.f32 %v729, %v772
    %v779 = vmul.f32 %v730, %v772
    %v780 = vmul.f32 %v731, %v772
    %v781 = vld [vmem:[#allocation2 + $0x41] sm:$0x1]
    %v782 = vperm.slane %v781, 0
    %784 = vrot.lane.b32.xlu0 %v782, 4
    %v785 = vpop.permute.xlu0 %784
    %v787 = vmul.f32 %v773, %v785
    %v788 = vmul.f32 %v774, %v785
    %v789 = vmul.f32 %v775, %v785
    %v790 = vmul.f32 %v776, %v785
    %v791 = vmul.f32 %v777, %v785
    %v792 = vmul.f32 %v778, %v785
    %v793 = vmul.f32 %v779, %v785
    %v794 = vmul.f32 %v780, %v785
    %v795 = vld [vmem:[#allocation2 + $0x42] sm:$0x1]
    %v796 = vperm.slane %v795, 0
    %798 = vrot.lane.b32.xlu0 %v796, 4
    %v799 = vpop.permute.xlu0 %798
    %v801 = vadd.f32 %v787, %v799
    %v802 = vadd.f32 %v788, %v799
    %v803 = vadd.f32 %v789, %v799
    %v804 = vadd.f32 %v790, %v799
    %v805 = vadd.f32 %v791, %v799
    %v806 = vadd.f32 %v792, %v799
    %v807 = vadd.f32 %v793, %v799
    %v808 = vadd.f32 %v794, %v799
    %817 = vrot.lane.b32.xlu0 %v319, 4
    %v818 = vpop.permute.xlu0 %817
    %819 = vrot.lane.b32.xlu0 %v322, 4
    %v820 = vpop.permute.xlu0 %819
    %821 = vrot.lane.b32.xlu0 %v325, 4
    %v822 = vpop.permute.xlu0 %821
    %823 = vrot.lane.b32.xlu0 %v328, 4
    %v824 = vpop.permute.xlu0 %823
    %825 = vrot.lane.b32.xlu0 %v331, 4
    %v826 = vpop.permute.xlu0 %825
    %827 = vrot.lane.b32.xlu0 %v334, 4
    %v828 = vpop.permute.xlu0 %827
    %829 = vrot.lane.b32.xlu0 %v337, 4
    %v830 = vpop.permute.xlu0 %829
    %831 = vrot.lane.b32.xlu0 %v340, 4
    %v832 = vpop.permute.xlu0 %831
    %v841 = vadd.f32 %v801, %v818
    %v842 = vadd.f32 %v802, %v820
    %v843 = vadd.f32 %v803, %v822
    %v844 = vadd.f32 %v804, %v824
    %v845 = vadd.f32 %v805, %v826
    %v846 = vadd.f32 %v806, %v828
    %v847 = vadd.f32 %v807, %v830
    %v848 = vadd.f32 %v808, %v832
    %v849 = vld [vmem:[#allocation2 + $0x18] sm:$0xf]
    %v850 = vld [vmem:[#allocation2 + $0x43] sm:$0x1]
    %v851 = vperm.slane %v850, 0
    %860 = vrot.lane.b32.xlu0 %v841, 124
    %v861 = vpop.permute.xlu0 %860
    %862 = vrot.lane.b32.xlu0 %v842, 124
    %v863 = vpop.permute.xlu0 %862
    %864 = vrot.lane.b32.xlu0 %v843, 124
    %v865 = vpop.permute.xlu0 %864
    %866 = vrot.lane.b32.xlu0 %v844, 124
    %v867 = vpop.permute.xlu0 %866
    %868 = vrot.lane.b32.xlu0 %v845, 124
    %v869 = vpop.permute.xlu0 %868
    %870 = vrot.lane.b32.xlu0 %v846, 124
    %v871 = vpop.permute.xlu0 %870
    %872 = vrot.lane.b32.xlu0 %v847, 124
    %v873 = vpop.permute.xlu0 %872
    %874 = vrot.lane.b32.xlu0 %v848, 124
    %v875 = vpop.permute.xlu0 %874
    %v876 = vsel %vm32, %v861, 0
    %v878 = vsel %vm32, %v863, 0
    %v880 = vsel %vm32, %v865, 0
    %v882 = vsel %vm32, %v867, 0
    %v884 = vsel %vm32, %v869, 0
    %v886 = vsel %vm32, %v871, 0
    %v888 = vsel %vm32, %v873, 0
    %v890 = vsel %vm32, %v875, 0
    %v893 = vsel %vm101, %v849, 0
    %895 = vmatpush.msra.mxu0 0.0
    %896 = vmatpush.msra.mxu0 0.0
    %897 = vmatpush.msra.mxu0 0.0
    %898 = vmatpush.msra.mxu0 0.0
    %899 = vmatpush.msra.mxu0 0.0
    %900 = vmatpush.msra.mxu0 0.0
    %901 = vmatpush.msra.mxu0 0.0
    %902 = vmatpush.msra.mxu0 0.0
    %903 = vmatpush.msra.mxu0 0.0
    %904 = vmatpush.msra.mxu0 0.0
    %905 = vmatpush.msra.mxu0 0.0
    %906 = vmatpush.msra.mxu0 0.0
    %907 = vmatpush.msra.mxu0 0.0
    %908 = vmatpush.msra.mxu0 0.0
    %909 = vmatpush.msra.mxu0 0.0
    %910 = vmatpush.msra.mxu0 %v893
    %911 = vmatmul.f32.gmra.mxu0 %v876
    %v912 = vpop.f32.mrf.mxu0
    %v913 = vadd.f32 %v851, %v912
    %914 = vmatmul.f32.gmra.mxu0 %v878
    %v915 = vpop.f32.mrf.mxu0
    %v916 = vadd.f32 %v851, %v915
    %917 = vmatmul.f32.gmra.mxu0 %v880
    %v918 = vpop.f32.mrf.mxu0
    %v919 = vadd.f32 %v851, %v918
    %920 = vmatmul.f32.gmra.mxu0 %v882
    %v921 = vpop.f32.mrf.mxu0
    %v922 = vadd.f32 %v851, %v921
    %923 = vmatmul.f32.gmra.mxu0 %v884
    %v924 = vpop.f32.mrf.mxu0
    %v925 = vadd.f32 %v851, %v924
    %926 = vmatmul.f32.gmra.mxu0 %v886
    %v927 = vpop.f32.mrf.mxu0
    %v928 = vadd.f32 %v851, %v927
    %929 = vmatmul.f32.gmra.mxu0 %v888
    %v930 = vpop.f32.mrf.mxu0
    %v931 = vadd.f32 %v851, %v930
    %932 = vmatmul.f32.gmra.mxu0 %v890
    %v933 = vpop.f32.mrf.mxu0
    %v934 = vadd.f32 %v851, %v933
    %935 = vdwg.mxu0
    %v936 = vsel %vm32, %v913, 0.0
    %937 = vadd.xlane.f32.xlu0 %v936
    %v938 = vpop.xlane.xlu0 %937
    %v939 = vsel %vm32, %v916, 0.0
    %940 = vadd.xlane.f32.xlu0 %v939
    %v941 = vpop.xlane.xlu0 %940
    %v942 = vsel %vm32, %v919, 0.0
    %943 = vadd.xlane.f32.xlu0 %v942
    %v944 = vpop.xlane.xlu0 %943
    %v945 = vsel %vm32, %v922, 0.0
    %946 = vadd.xlane.f32.xlu0 %v945
    %v947 = vpop.xlane.xlu0 %946
    %v948 = vsel %vm32, %v925, 0.0
    %949 = vadd.xlane.f32.xlu0 %v948
    %v950 = vpop.xlane.xlu0 %949
    %v951 = vsel %vm32, %v928, 0.0
    %952 = vadd.xlane.f32.xlu0 %v951
    %v953 = vpop.xlane.xlu0 %952
    %v954 = vsel %vm32, %v931, 0.0
    %955 = vadd.xlane.f32.xlu0 %v954
    %v956 = vpop.xlane.xlu0 %955
    %v957 = vsel %vm32, %v934, 0.0
    %958 = vadd.xlane.f32.xlu0 %v957
    %v959 = vpop.xlane.xlu0 %958
    %v960 = vrcp.pop 4.0
    %v961 = vmul.f32 4.0, %v960
    %v962 = vsub.f32 1.0, %v961
    %v963 = vmul.f32 %v960, %v962
    %v964 = vadd.f32 %v960, %v963
    %vm965 = vweird.f32 %v960
    %v966 = vsel %vm965, %v960, %v964
    %v967 = vmul.f32 %v938, %v966
    %v968 = vmul.f32 %v941, %v966
    %v969 = vmul.f32 %v944, %v966
    %v970 = vmul.f32 %v947, %v966
    %v971 = vmul.f32 %v950, %v966
    %v972 = vmul.f32 %v953, %v966
    %v973 = vmul.f32 %v956, %v966
    %v974 = vmul.f32 %v959, %v966
    %v975 = vsub.f32 %v913, %v967
    %v976 = vsub.f32 %v916, %v968
    %v977 = vsub.f32 %v919, %v969
    %v978 = vsub.f32 %v922, %v970
    %v979 = vsub.f32 %v925, %v971
    %v980 = vsub.f32 %v928, %v972
    %v981 = vsub.f32 %v931, %v973
    %v982 = vsub.f32 %v934, %v974
    %v983 = vmul.f32 %v975, %v975
    %v984 = vmul.f32 %v976, %v976
    %v985 = vmul.f32 %v977, %v977
    %v986 = vmul.f32 %v978, %v978
    %v987 = vmul.f32 %v979, %v979
    %v988 = vmul.f32 %v980, %v980
    %v989 = vmul.f32 %v981, %v981
    %v990 = vmul.f32 %v982, %v982
    %v991 = vsel %vm32, %v983, 0.0
    %992 = vadd.xlane.f32.xlu0 %v991
    %v993 = vpop.xlane.xlu0 %992
    %v994 = vsel %vm32, %v984, 0.0
    %995 = vadd.xlane.f32.xlu0 %v994
    %v996 = vpop.xlane.xlu0 %995
    %v997 = vsel %vm32, %v985, 0.0
    %998 = vadd.xlane.f32.xlu0 %v997
    %v999 = vpop.xlane.xlu0 %998
    %v1000 = vsel %vm32, %v986, 0.0
    %1001 = vadd.xlane.f32.xlu0 %v1000
    %v1002 = vpop.xlane.xlu0 %1001
    %v1003 = vsel %vm32, %v987, 0.0
    %1004 = vadd.xlane.f32.xlu0 %v1003
    %v1005 = vpop.xlane.xlu0 %1004
    %v1006 = vsel %vm32, %v988, 0.0
    %1007 = vadd.xlane.f32.xlu0 %v1006
    %v1008 = vpop.xlane.xlu0 %1007
    %v1009 = vsel %vm32, %v989, 0.0
    %1010 = vadd.xlane.f32.xlu0 %v1009
    %v1011 = vpop.xlane.xlu0 %1010
    %v1012 = vsel %vm32, %v990, 0.0
    %1013 = vadd.xlane.f32.xlu0 %v1012
    %v1014 = vpop.xlane.xlu0 %1013
    %v1015 = vmul.f32 %v993, %v966
    %v1016 = vmul.f32 %v996, %v966
    %v1017 = vmul.f32 %v999, %v966
    %v1018 = vmul.f32 %v1002, %v966
    %v1019 = vmul.f32 %v1005, %v966
    %v1020 = vmul.f32 %v1008, %v966
    %v1021 = vmul.f32 %v1011, %v966
    %v1022 = vmul.f32 %v1014, %v966
    %v1023 = vadd.f32 %v1015, 1e-05
    %v1024 = vadd.f32 %v1016, 1e-05
    %v1025 = vadd.f32 %v1017, 1e-05
    %v1026 = vadd.f32 %v1018, 1e-05
    %v1027 = vadd.f32 %v1019, 1e-05
    %v1028 = vadd.f32 %v1020, 1e-05
    %v1029 = vadd.f32 %v1021, 1e-05
    %v1030 = vadd.f32 %v1022, 1e-05
    %v1031 = vrsqrt.pop %v1023
    %v1032 = vmul.f32 %v1031, %v1023
    %v1033 = vmul.f32 %v1032, %v1031
    %v1034 = vmul.f32 0.5, %v1033
    %v1035 = vsub.f32 1.5, %v1034
    %v1036 = vmul.f32 %v1031, %v1035
    %vm1037 = vweird.f32 %v1023
    %vm1038 = vweird.f32 %v1031
    %vm1039 = vmor %vm1037, %vm1038
    %v1040 = vsel %vm1039, %v1031, %v1036
    %v1041 = vrsqrt.pop %v1024
    %v1042 = vmul.f32 %v1041, %v1024
    %v1043 = vmul.f32 %v1042, %v1041
    %v1044 = vmul.f32 0.5, %v1043
    %v1045 = vsub.f32 1.5, %v1044
    %v1046 = vmul.f32 %v1041, %v1045
    %vm1047 = vweird.f32 %v1024
    %vm1048 = vweird.f32 %v1041
    %vm1049 = vmor %vm1047, %vm1048
    %v1050 = vsel %vm1049, %v1041, %v1046
    %v1051 = vrsqrt.pop %v1025
    %v1052 = vmul.f32 %v1051, %v1025
    %v1053 = vmul.f32 %v1052, %v1051
    %v1054 = vmul.f32 0.5, %v1053
    %v1055 = vsub.f32 1.5, %v1054
    %v1056 = vmul.f32 %v1051, %v1055
    %vm1057 = vweird.f32 %v1025
    %vm1058 = vweird.f32 %v1051
    %vm1059 = vmor %vm1057, %vm1058
    %v1060 = vsel %vm1059, %v1051, %v1056
    %v1061 = vrsqrt.pop %v1026
    %v1062 = vmul.f32 %v1061, %v1026
    %v1063 = vmul.f32 %v1062, %v1061
    %v1064 = vmul.f32 0.5, %v1063
    %v1065 = vsub.f32 1.5, %v1064
    %v1066 = vmul.f32 %v1061, %v1065
    %vm1067 = vweird.f32 %v1026
    %vm1068 = vweird.f32 %v1061
    %vm1069 = vmor %vm1067, %vm1068
    %v1070 = vsel %vm1069, %v1061, %v1066
    %v1071 = vrsqrt.pop %v1027
    %v1072 = vmul.f32 %v1071, %v1027
    %v1073 = vmul.f32 %v1072, %v1071
    %v1074 = vmul.f32 0.5, %v1073
    %v1075 = vsub.f32 1.5, %v1074
    %v1076 = vmul.f32 %v1071, %v1075
    %vm1077 = vweird.f32 %v1027
    %vm1078 = vweird.f32 %v1071
    %vm1079 = vmor %vm1077, %vm1078
    %v1080 = vsel %vm1079, %v1071, %v1076
    %v1081 = vrsqrt.pop %v1028
    %v1082 = vmul.f32 %v1081, %v1028
    %v1083 = vmul.f32 %v1082, %v1081
    %v1084 = vmul.f32 0.5, %v1083
    %v1085 = vsub.f32 1.5, %v1084
    %v1086 = vmul.f32 %v1081, %v1085
    %vm1087 = vweird.f32 %v1028
    %vm1088 = vweird.f32 %v1081
    %vm1089 = vmor %vm1087, %vm1088
    %v1090 = vsel %vm1089, %v1081, %v1086
    %v1091 = vrsqrt.pop %v1029
    %v1092 = vmul.f32 %v1091, %v1029
    %v1093 = vmul.f32 %v1092, %v1091
    %v1094 = vmul.f32 0.5, %v1093
    %v1095 = vsub.f32 1.5, %v1094
    %v1096 = vmul.f32 %v1091, %v1095
    %vm1097 = vweird.f32 %v1029
    %vm1098 = vweird.f32 %v1091
    %vm1099 = vmor %vm1097, %vm1098
    %v1100 = vsel %vm1099, %v1091, %v1096
    %v1101 = vrsqrt.pop %v1030
    %v1102 = vmul.f32 %v1101, %v1030
    %v1103 = vmul.f32 %v1102, %v1101
    %v1104 = vmul.f32 0.5, %v1103
    %v1105 = vsub.f32 1.5, %v1104
    %v1106 = vmul.f32 %v1101, %v1105
    %vm1107 = vweird.f32 %v1030
    %vm1108 = vweird.f32 %v1101
    %vm1109 = vmor %vm1107, %vm1108
    %v1110 = vsel %vm1109, %v1101, %v1106
    %v1111 = vmul.f32 %v975, %v1040
    %v1112 = vmul.f32 %v976, %v1050
    %v1113 = vmul.f32 %v977, %v1060
    %v1114 = vmul.f32 %v978, %v1070
    %v1115 = vmul.f32 %v979, %v1080
    %v1116 = vmul.f32 %v980, %v1090
    %v1117 = vmul.f32 %v981, %v1100
    %v1118 = vmul.f32 %v982, %v1110
    %v1119 = vld [vmem:[#allocation2 + $0x44] sm:$0x1]
    %v1120 = vperm.slane %v1119, 0
    %v1121 = vmul.f32 %v1111, %v1120
    %v1122 = vmul.f32 %v1112, %v1120
    %v1123 = vmul.f32 %v1113, %v1120
    %v1124 = vmul.f32 %v1114, %v1120
    %v1125 = vmul.f32 %v1115, %v1120
    %v1126 = vmul.f32 %v1116, %v1120
    %v1127 = vmul.f32 %v1117, %v1120
    %v1128 = vmul.f32 %v1118, %v1120
    %v1129 = vld [vmem:[#allocation2 + $0x45] sm:$0x1]
    %v1130 = vperm.slane %v1129, 0
    %v1131 = vadd.f32 %v1121, %v1130
    %v1132 = vadd.f32 %v1122, %v1130
    %v1133 = vadd.f32 %v1123, %v1130
    %v1134 = vadd.f32 %v1124, %v1130
    %v1135 = vadd.f32 %v1125, %v1130
    %v1136 = vadd.f32 %v1126, %v1130
    %v1137 = vadd.f32 %v1127, %v1130
    %v1138 = vadd.f32 %v1128, %v1130
    %v1139 = vld [vmem:[#allocation2 + $0x46] sm:$0x1]
    %v1140 = vperm.slane %v1139, 0
    %1141 = vrot.lane.b32.xlu0 %v849, 124
    %v1142 = vpop.permute.xlu0 %1141
    %v1144 = vsel %vm32, %v1131, 0
    %v1147 = vsel %vm32, %v1132, 0
    %v1150 = vsel %vm32, %v1133, 0
    %v1153 = vsel %vm32, %v1134, 0
    %v1156 = vsel %vm32, %v1135, 0
    %v1159 = vsel %vm32, %v1136, 0
    %v1162 = vsel %vm32, %v1137, 0
    %v1165 = vsel %vm32, %v1138, 0
    %v1167 = vsel %vm101, %v1142, 0
    %1169 = vmatpush.msra.mxu0 0.0
    %1170 = vmatpush.msra.mxu0 0.0
    %1171 = vmatpush.msra.mxu0 0.0
    %1172 = vmatpush.msra.mxu0 0.0
    %1173 = vmatpush.msra.mxu0 0.0
    %1174 = vmatpush.msra.mxu0 0.0
    %1175 = vmatpush.msra.mxu0 0.0
    %1176 = vmatpush.msra.mxu0 0.0
    %1177 = vmatpush.msra.mxu0 0.0
    %1178 = vmatpush.msra.mxu0 0.0
    %1179 = vmatpush.msra.mxu0 0.0
    %1180 = vmatpush.msra.mxu0 0.0
    %1181 = vmatpush.msra.mxu0 0.0
    %1182 = vmatpush.msra.mxu0 0.0
    %1183 = vmatpush.msra.mxu0 0.0
    %1184 = vmatpush.msra.mxu0 %v1167
    %1185 = vmatmul.f32.gmra.mxu0 %v1144
    %v1186 = vpop.f32.mrf.mxu0
    %v1187 = vadd.f32 %v1140, %v1186
    %1188 = vmatmul.f32.gmra.mxu0 %v1147
    %v1189 = vpop.f32.mrf.mxu0
    %v1190 = vadd.f32 %v1140, %v1189
    %1191 = vmatmul.f32.gmra.mxu0 %v1150
    %v1192 = vpop.f32.mrf.mxu0
    %v1193 = vadd.f32 %v1140, %v1192
    %1194 = vmatmul.f32.gmra.mxu0 %v1153
    %v1195 = vpop.f32.mrf.mxu0
    %v1196 = vadd.f32 %v1140, %v1195
    %1197 = vmatmul.f32.gmra.mxu0 %v1156
    %v1198 = vpop.f32.mrf.mxu0
    %v1199 = vadd.f32 %v1140, %v1198
    %1200 = vmatmul.f32.gmra.mxu0 %v1159
    %v1201 = vpop.f32.mrf.mxu0
    %v1202 = vadd.f32 %v1140, %v1201
    %1203 = vmatmul.f32.gmra.mxu0 %v1162
    %v1204 = vpop.f32.mrf.mxu0
    %v1205 = vadd.f32 %v1140, %v1204
    %1206 = vmatmul.f32.gmra.mxu0 %v1165
    %v1207 = vpop.f32.mrf.mxu0
    %v1208 = vadd.f32 %v1140, %v1207
    %1209 = vdwg.mxu0
    %v1210 = vld [vmem:[#allocation2 + $0x1e0] sm:$0xff]
    %v1211 = vld [vmem:[#allocation2 + $0x1e8] sm:$0xff]
    %v1212 = vld [vmem:[#allocation2 + $0x1f0] sm:$0xff]
    %v1213 = vld [vmem:[#allocation2 + $0x1f8] sm:$0xff]
    %v1214 = vld [vmem:[#allocation2 + $0x200] sm:$0xff]
    %v1215 = vld [vmem:[#allocation2 + $0x208] sm:$0xff]
    %v1216 = vld [vmem:[#allocation2 + $0x210] sm:$0xff]
    %v1217 = vld [vmem:[#allocation2 + $0x218] sm:$0xff]
    %1226 = vrot.lane.b32.xlu0 %v1187, 124
    %v1227 = vpop.permute.xlu0 %1226
    %1228 = vrot.lane.b32.xlu0 %v1190, 124
    %v1229 = vpop.permute.xlu0 %1228
    %1230 = vrot.lane.b32.xlu0 %v1193, 124
    %v1231 = vpop.permute.xlu0 %1230
    %1232 = vrot.lane.b32.xlu0 %v1196, 124
    %v1233 = vpop.permute.xlu0 %1232
    %1234 = vrot.lane.b32.xlu0 %v1199, 124
    %v1235 = vpop.permute.xlu0 %1234
    %1236 = vrot.lane.b32.xlu0 %v1202, 124
    %v1237 = vpop.permute.xlu0 %1236
    %1238 = vrot.lane.b32.xlu0 %v1205, 124
    %v1239 = vpop.permute.xlu0 %1238
    %1240 = vrot.lane.b32.xlu0 %v1208, 124
    %v1241 = vpop.permute.xlu0 %1240
    %vm1242 = vcmask 15360
    %v1243 = vsel %vm1242, %v1187, 0
    %v1245 = vsel %vm1242, %v1190, 0
    %v1247 = vsel %vm1242, %v1193, 0
    %v1249 = vsel %vm1242, %v1196, 0
    %v1251 = vsel %vm1242, %v1199, 0
    %v1253 = vsel %vm1242, %v1202, 0
    %v1255 = vsel %vm1242, %v1205, 0
    %v1257 = vsel %vm1242, %v1208, 0
    %v1259 = vsel %vm1242, %v1227, 0
    %v1261 = vsel %vm1242, %v1229, 0
    %v1263 = vsel %vm1242, %v1231, 0
    %v1265 = vsel %vm1242, %v1233, 0
    %v1267 = vsel %vm1242, %v1235, 0
    %v1269 = vsel %vm1242, %v1237, 0
    %v1271 = vsel %vm1242, %v1239, 0
    %v1273 = vsel %vm1242, %v1241, 0
    %1275 = vmatpush.xpose.msra.mxu0 0.0
    %1276 = vmatpush.xpose.msra.mxu0 0.0
    %1277 = vmatpush.xpose.msra.mxu0 0.0
    %1278 = vmatpush.xpose.msra.mxu0 0.0
    %1279 = vmatpush.xpose.msra.mxu0 0.0
    %1280 = vmatpush.xpose.msra.mxu0 0.0
    %1281 = vmatpush.xpose.msra.mxu0 0.0
    %1282 = vmatpush.xpose.msra.mxu0 0.0
    %1283 = vmatpush.xpose.msra.mxu0 %v1273
    %1284 = vmatpush.xpose.msra.mxu0 %v1271
    %1285 = vmatpush.xpose.msra.mxu0 %v1269
    %1286 = vmatpush.xpose.msra.mxu0 %v1267
    %1287 = vmatpush.xpose.msra.mxu0 %v1265
    %1288 = vmatpush.xpose.msra.mxu0 %v1263
    %1289 = vmatpush.xpose.msra.mxu0 %v1261
    %1290 = vmatpush.xpose.msra.mxu0 %v1259
    %1291 = vmatmul.f32.gmra.mxu0 %v1243
    %v1292 = vpop.f32.mrf.mxu0
    %v1293 = vadd.f32 0.0, %v1292
    %1294 = vmatmul.f32.gmra.mxu0 %v1245
    %v1295 = vpop.f32.mrf.mxu0
    %v1296 = vadd.f32 0.0, %v1295
    %1297 = vmatmul.f32.gmra.mxu0 %v1247
    %v1298 = vpop.f32.mrf.mxu0
    %v1299 = vadd.f32 0.0, %v1298
    %1300 = vmatmul.f32.gmra.mxu0 %v1249
    %v1301 = vpop.f32.mrf.mxu0
    %v1302 = vadd.f32 0.0, %v1301
    %1303 = vmatmul.f32.gmra.mxu0 %v1251
    %v1304 = vpop.f32.mrf.mxu0
    %v1305 = vadd.f32 0.0, %v1304
    %1306 = vmatmul.f32.gmra.mxu0 %v1253
    %v1307 = vpop.f32.mrf.mxu0
    %v1308 = vadd.f32 0.0, %v1307
    %1309 = vmatmul.f32.gmra.mxu0 %v1255
    %v1310 = vpop.f32.mrf.mxu0
    %v1311 = vadd.f32 0.0, %v1310
    %1312 = vmatmul.f32.gmra.mxu0 %v1257
    %v1313 = vpop.f32.mrf.mxu0
    %v1314 = vadd.f32 0.0, %v1313
    %1315 = vdwg.mxu0
    %v1316 = vmul.f32 %v1293, 0.70710677
    %v1317 = vmul.f32 %v1296, 0.70710677
    %v1318 = vmul.f32 %v1299, 0.70710677
    %v1319 = vmul.f32 %v1302, 0.70710677
    %v1320 = vmul.f32 %v1305, 0.70710677
    %v1321 = vmul.f32 %v1308, 0.70710677
    %v1322 = vmul.f32 %v1311, 0.70710677
    %v1323 = vmul.f32 %v1314, 0.70710677
    %v1324 = vsub.f32 %v1316, %v1210
    %v1325 = vsub.f32 %v1317, %v1211
    %v1326 = vsub.f32 %v1318, %v1212
    %v1327 = vsub.f32 %v1319, %v1213
    %v1328 = vsub.f32 %v1320, %v1214
    %v1329 = vsub.f32 %v1321, %v1215
    %v1330 = vsub.f32 %v1322, %v1216
    %v1331 = vsub.f32 %v1323, %v1217
    %v1332 = vsel %vm276, %v1324, -inf
    %1333 = vmax.xlane.f32.xlu0 %v1332
    %v1334 = vpop.xlane.xlu0 %1333
    %v1335 = vsel %vm276, %v1325, -inf
    %1336 = vmax.xlane.f32.xlu0 %v1335
    %v1337 = vpop.xlane.xlu0 %1336
    %v1338 = vsel %vm276, %v1326, -inf
    %1339 = vmax.xlane.f32.xlu0 %v1338
    %v1340 = vpop.xlane.xlu0 %1339
    %v1341 = vsel %vm276, %v1327, -inf
    %1342 = vmax.xlane.f32.xlu0 %v1341
    %v1343 = vpop.xlane.xlu0 %1342
    %v1344 = vsel %vm276, %v1328, -inf
    %1345 = vmax.xlane.f32.xlu0 %v1344
    %v1346 = vpop.xlane.xlu0 %1345
    %v1347 = vsel %vm276, %v1329, -inf
    %1348 = vmax.xlane.f32.xlu0 %v1347
    %v1349 = vpop.xlane.xlu0 %1348
    %v1350 = vsel %vm276, %v1330, -inf
    %1351 = vmax.xlane.f32.xlu0 %v1350
    %v1352 = vpop.xlane.xlu0 %1351
    %v1353 = vsel %vm276, %v1331, -inf
    %1354 = vmax.xlane.f32.xlu0 %v1353
    %v1355 = vpop.xlane.xlu0 %1354
    %v1356 = vsub.f32 %v1324, %v1334
    %v1357 = vsub.f32 %v1325, %v1337
    %v1358 = vsub.f32 %v1326, %v1340
    %v1359 = vsub.f32 %v1327, %v1343
    %v1360 = vsub.f32 %v1328, %v1346
    %v1361 = vsub.f32 %v1329, %v1349
    %v1362 = vsub.f32 %v1330, %v1352
    %v1363 = vsub.f32 %v1331, %v1355
    %v1364 = vmul.f32 %v1356, 1.442695
    %v1365 = vpow.pop %v1364
    %v1366 = vmul.f32 %v1357, 1.442695
    %v1367 = vpow.pop %v1366
    %v1368 = vmul.f32 %v1358, 1.442695
    %v1369 = vpow.pop %v1368
    %v1370 = vmul.f32 %v1359, 1.442695
    %v1371 = vpow.pop %v1370
    %v1372 = vmul.f32 %v1360, 1.442695
    %v1373 = vpow.pop %v1372
    %v1374 = vmul.f32 %v1361, 1.442695
    %v1375 = vpow.pop %v1374
    %v1376 = vmul.f32 %v1362, 1.442695
    %v1377 = vpow.pop %v1376
    %v1378 = vmul.f32 %v1363, 1.442695
    %v1379 = vpow.pop %v1378
    %v1380 = vsel %vm276, %v1365, 0.0
    %1381 = vadd.xlane.f32.xlu0 %v1380
    %v1382 = vpop.xlane.xlu0 %1381
    %v1383 = vsel %vm276, %v1367, 0.0
    %1384 = vadd.xlane.f32.xlu0 %v1383
    %v1385 = vpop.xlane.xlu0 %1384
    %v1386 = vsel %vm276, %v1369, 0.0
    %1387 = vadd.xlane.f32.xlu0 %v1386
    %v1388 = vpop.xlane.xlu0 %1387
    %v1389 = vsel %vm276, %v1371, 0.0
    %1390 = vadd.xlane.f32.xlu0 %v1389
    %v1391 = vpop.xlane.xlu0 %1390
    %v1392 = vsel %vm276, %v1373, 0.0
    %1393 = vadd.xlane.f32.xlu0 %v1392
    %v1394 = vpop.xlane.xlu0 %1393
    %v1395 = vsel %vm276, %v1375, 0.0
    %1396 = vadd.xlane.f32.xlu0 %v1395
    %v1397 = vpop.xlane.xlu0 %1396
    %v1398 = vsel %vm276, %v1377, 0.0
    %1399 = vadd.xlane.f32.xlu0 %v1398
    %v1400 = vpop.xlane.xlu0 %1399
    %v1401 = vsel %vm276, %v1379, 0.0
    %1402 = vadd.xlane.f32.xlu0 %v1401
    %v1403 = vpop.xlane.xlu0 %1402
    %v1404 = vrcp.pop %v1382
    %v1405 = vrcp.pop %v1385
    %v1406 = vrcp.pop %v1388
    %v1407 = vrcp.pop %v1391
    %v1408 = vrcp.pop %v1394
    %v1409 = vrcp.pop %v1397
    %v1410 = vrcp.pop %v1400
    %v1411 = vrcp.pop %v1403
    %v1412 = vmul.f32 %v1365, %v1404
    %v1413 = vmul.f32 %v1367, %v1405
    %v1414 = vmul.f32 %v1369, %v1406
    %v1415 = vmul.f32 %v1371, %v1407
    %v1416 = vmul.f32 %v1373, %v1408
    %v1417 = vmul.f32 %v1375, %v1409
    %v1418 = vmul.f32 %v1377, %v1410
    %v1419 = vmul.f32 %v1379, %v1411
    %1420 = vrot.lane.b32.xlu0 %v1187, 120
    %v1421 = vpop.permute.xlu0 %1420
    %1422 = vrot.lane.b32.xlu0 %v1190, 120
    %v1423 = vpop.permute.xlu0 %1422
    %1424 = vrot.lane.b32.xlu0 %v1193, 120
    %v1425 = vpop.permute.xlu0 %1424
    %1426 = vrot.lane.b32.xlu0 %v1196, 120
    %v1427 = vpop.permute.xlu0 %1426
    %1428 = vrot.lane.b32.xlu0 %v1199, 120
    %v1429 = vpop.permute.xlu0 %1428
    %1430 = vrot.lane.b32.xlu0 %v1202, 120
    %v1431 = vpop.permute.xlu0 %1430
    %1432 = vrot.lane.b32.xlu0 %v1205, 120
    %v1433 = vpop.permute.xlu0 %1432
    %1434 = vrot.lane.b32.xlu0 %v1208, 120
    %v1435 = vpop.permute.xlu0 %1434
    %v1445 = vsel %vm276, %v1412, 0
    %v1448 = vsel %vm276, %v1413, 0
    %v1451 = vsel %vm276, %v1414, 0
    %v1454 = vsel %vm276, %v1415, 0
    %v1457 = vsel %vm276, %v1416, 0
    %v1460 = vsel %vm276, %v1417, 0
    %v1463 = vsel %vm276, %v1418, 0
    %v1466 = vsel %vm276, %v1419, 0
    %1468 = vmatpush.msra.mxu0 0.0
    %1469 = vmatpush.msra.mxu0 0.0
    %1470 = vmatpush.msra.mxu0 0.0
    %1471 = vmatpush.msra.mxu0 0.0
    %1472 = vmatpush.msra.mxu0 0.0
    %1473 = vmatpush.msra.mxu0 0.0
    %1474 = vmatpush.msra.mxu0 0.0
    %1475 = vmatpush.msra.mxu0 0.0
    %1476 = vmatpush.msra.mxu0 %v1435
    %1477 = vmatpush.msra.mxu0 %v1433
    %1478 = vmatpush.msra.mxu0 %v1431
    %1479 = vmatpush.msra.mxu0 %v1429
    %1480 = vmatpush.msra.mxu0 %v1427
    %1481 = vmatpush.msra.mxu0 %v1425
    %1482 = vmatpush.msra.mxu0 %v1423
    %1483 = vmatpush.msra.mxu0 %v1421
    %1484 = vmatmul.f32.gmra.mxu0 %v1445
    %v1485 = vpop.f32.mrf.mxu0
    %v1486 = vadd.f32 0.0, %v1485
    %1487 = vmatmul.f32.gmra.mxu0 %v1448
    %v1488 = vpop.f32.mrf.mxu0
    %v1489 = vadd.f32 0.0, %v1488
    %1490 = vmatmul.f32.gmra.mxu0 %v1451
    %v1491 = vpop.f32.mrf.mxu0
    %v1492 = vadd.f32 0.0, %v1491
    %1493 = vmatmul.f32.gmra.mxu0 %v1454
    %v1494 = vpop.f32.mrf.mxu0
    %v1495 = vadd.f32 0.0, %v1494
    %1496 = vmatmul.f32.gmra.mxu0 %v1457
    %v1497 = vpop.f32.mrf.mxu0
    %v1498 = vadd.f32 0.0, %v1497
    %1499 = vmatmul.f32.gmra.mxu0 %v1460
    %v1500 = vpop.f32.mrf.mxu0
    %v1501 = vadd.f32 0.0, %v1500
    %1502 = vmatmul.f32.gmra.mxu0 %v1463
    %v1503 = vpop.f32.mrf.mxu0
    %v1504 = vadd.f32 0.0, %v1503
    %1505 = vmatmul.f32.gmra.mxu0 %v1466
    %v1506 = vpop.f32.mrf.mxu0
    %v1507 = vadd.f32 0.0, %v1506
    %1508 = vdwg.mxu0
    %1509 = vrot.lane.b32.xlu0 %v1187, 126
    %v1510 = vpop.permute.xlu0 %1509
    %1511 = vrot.lane.b32.xlu0 %v1190, 126
    %v1512 = vpop.permute.xlu0 %1511
    %1513 = vrot.lane.b32.xlu0 %v1193, 126
    %v1514 = vpop.permute.xlu0 %1513
    %1515 = vrot.lane.b32.xlu0 %v1196, 126
    %v1516 = vpop.permute.xlu0 %1515
    %1517 = vrot.lane.b32.xlu0 %v1199, 126
    %v1518 = vpop.permute.xlu0 %1517
    %1519 = vrot.lane.b32.xlu0 %v1202, 126
    %v1520 = vpop.permute.xlu0 %1519
    %1521 = vrot.lane.b32.xlu0 %v1205, 126
    %v1522 = vpop.permute.xlu0 %1521
    %1523 = vrot.lane.b32.xlu0 %v1208, 126
    %v1524 = vpop.permute.xlu0 %1523
    %1525 = vrot.lane.b32.xlu0 %v1187, 122
    %v1526 = vpop.permute.xlu0 %1525
    %1527 = vrot.lane.b32.xlu0 %v1190, 122
    %v1528 = vpop.permute.xlu0 %1527
    %1529 = vrot.lane.b32.xlu0 %v1193, 122
    %v1530 = vpop.permute.xlu0 %1529
    %1531 = vrot.lane.b32.xlu0 %v1196, 122
    %v1532 = vpop.permute.xlu0 %1531
    %1533 = vrot.lane.b32.xlu0 %v1199, 122
    %v1534 = vpop.permute.xlu0 %1533
    %1535 = vrot.lane.b32.xlu0 %v1202, 122
    %v1536 = vpop.permute.xlu0 %1535
    %1537 = vrot.lane.b32.xlu0 %v1205, 122
    %v1538 = vpop.permute.xlu0 %1537
    %1539 = vrot.lane.b32.xlu0 %v1208, 122
    %v1540 = vpop.permute.xlu0 %1539
    %v1541 = vsel %vm1242, %v1510, 0
    %v1543 = vsel %vm1242, %v1512, 0
    %v1545 = vsel %vm1242, %v1514, 0
    %v1547 = vsel %vm1242, %v1516, 0
    %v1549 = vsel %vm1242, %v1518, 0
    %v1551 = vsel %vm1242, %v1520, 0
    %v1553 = vsel %vm1242, %v1522, 0
    %v1555 = vsel %vm1242, %v1524, 0
    %v1557 = vsel %vm1242, %v1526, 0
    %v1559 = vsel %vm1242, %v1528, 0
    %v1561 = vsel %vm1242, %v1530, 0
    %v1563 = vsel %vm1242, %v1532, 0
    %v1565 = vsel %vm1242, %v1534, 0
    %v1567 = vsel %vm1242, %v1536, 0
    %v1569 = vsel %vm1242, %v1538, 0
    %v1571 = vsel %vm1242, %v1540, 0
    %1573 = vmatpush.xpose.msra.mxu0 0.0
    %1574 = vmatpush.xpose.msra.mxu0 0.0
    %1575 = vmatpush.xpose.msra.mxu0 0.0
    %1576 = vmatpush.xpose.msra.mxu0 0.0
    %1577 = vmatpush.xpose.msra.mxu0 0.0
    %1578 = vmatpush.xpose.msra.mxu0 0.0
    %1579 = vmatpush.xpose.msra.mxu0 0.0
    %1580 = vmatpush.xpose.msra.mxu0 0.0
    %1581 = vmatpush.xpose.msra.mxu0 %v1571
    %1582 = vmatpush.xpose.msra.mxu0 %v1569
    %1583 = vmatpush.xpose.msra.mxu0 %v1567
    %1584 = vmatpush.xpose.msra.mxu0 %v1565
    %1585 = vmatpush.xpose.msra.mxu0 %v1563
    %1586 = vmatpush.xpose.msra.mxu0 %v1561
    %1587 = vmatpush.xpose.msra.mxu0 %v1559
    %1588 = vmatpush.xpose.msra.mxu0 %v1557
    %1589 = vmatmul.f32.gmra.mxu0 %v1541
    %v1590 = vpop.f32.mrf.mxu0
    %v1591 = vadd.f32 0.0, %v1590
    %1592 = vmatmul.f32.gmra.mxu0 %v1543
    %v1593 = vpop.f32.mrf.mxu0
    %v1594 = vadd.f32 0.0, %v1593
    %1595 = vmatmul.f32.gmra.mxu0 %v1545
    %v1596 = vpop.f32.mrf.mxu0
    %v1597 = vadd.f32 0.0, %v1596
    %1598 = vmatmul.f32.gmra.mxu0 %v1547
    %v1599 = vpop.f32.mrf.mxu0
    %v1600 = vadd.f32 0.0, %v1599
    %1601 = vmatmul.f32.gmra.mxu0 %v1549
    %v1602 = vpop.f32.mrf.mxu0
    %v1603 = vadd.f32 0.0, %v1602
    %1604 = vmatmul.f32.gmra.mxu0 %v1551
    %v1605 = vpop.f32.mrf.mxu0
    %v1606 = vadd.f32 0.0, %v1605
    %1607 = vmatmul.f32.gmra.mxu0 %v1553
    %v1608 = vpop.f32.mrf.mxu0
    %v1609 = vadd.f32 0.0, %v1608
    %1610 = vmatmul.f32.gmra.mxu0 %v1555
    %v1611 = vpop.f32.mrf.mxu0
    %v1612 = vadd.f32 0.0, %v1611
    %1613 = vdwg.mxu0
    %v1614 = vmul.f32 %v1591, 0.70710677
    %v1615 = vmul.f32 %v1594, 0.70710677
    %v1616 = vmul.f32 %v1597, 0.70710677
    %v1617 = vmul.f32 %v1600, 0.70710677
    %v1618 = vmul.f32 %v1603, 0.70710677
    %v1619 = vmul.f32 %v1606, 0.70710677
    %v1620 = vmul.f32 %v1609, 0.70710677
    %v1621 = vmul.f32 %v1612, 0.70710677
    %v1622 = vsub.f32 %v1614, %v1210
    %v1623 = vsub.f32 %v1615, %v1211
    %v1624 = vsub.f32 %v1616, %v1212
    %v1625 = vsub.f32 %v1617, %v1213
    %v1626 = vsub.f32 %v1618, %v1214
    %v1627 = vsub.f32 %v1619, %v1215
    %v1628 = vsub.f32 %v1620, %v1216
    %v1629 = vsub.f32 %v1621, %v1217
    %v1630 = vsel %vm276, %v1622, -inf
    %1631 = vmax.xlane.f32.xlu0 %v1630
    %v1632 = vpop.xlane.xlu0 %1631
    %v1633 = vsel %vm276, %v1623, -inf
    %1634 = vmax.xlane.f32.xlu0 %v1633
    %v1635 = vpop.xlane.xlu0 %1634
    %v1636 = vsel %vm276, %v1624, -inf
    %1637 = vmax.xlane.f32.xlu0 %v1636
    %v1638 = vpop.xlane.xlu0 %1637
    %v1639 = vsel %vm276, %v1625, -inf
    %1640 = vmax.xlane.f32.xlu0 %v1639
    %v1641 = vpop.xlane.xlu0 %1640
    %v1642 = vsel %vm276, %v1626, -inf
    %1643 = vmax.xlane.f32.xlu0 %v1642
    %v1644 = vpop.xlane.xlu0 %1643
    %v1645 = vsel %vm276, %v1627, -inf
    %1646 = vmax.xlane.f32.xlu0 %v1645
    %v1647 = vpop.xlane.xlu0 %1646
    %v1648 = vsel %vm276, %v1628, -inf
    %1649 = vmax.xlane.f32.xlu0 %v1648
    %v1650 = vpop.xlane.xlu0 %1649
    %v1651 = vsel %vm276, %v1629, -inf
    %1652 = vmax.xlane.f32.xlu0 %v1651
    %v1653 = vpop.xlane.xlu0 %1652
    %v1654 = vsub.f32 %v1622, %v1632
    %v1655 = vsub.f32 %v1623, %v1635
    %v1656 = vsub.f32 %v1624, %v1638
    %v1657 = vsub.f32 %v1625, %v1641
    %v1658 = vsub.f32 %v1626, %v1644
    %v1659 = vsub.f32 %v1627, %v1647
    %v1660 = vsub.f32 %v1628, %v1650
    %v1661 = vsub.f32 %v1629, %v1653
    %v1662 = vmul.f32 %v1654, 1.442695
    %v1663 = vpow.pop %v1662
    %v1664 = vmul.f32 %v1655, 1.442695
    %v1665 = vpow.pop %v1664
    %v1666 = vmul.f32 %v1656, 1.442695
    %v1667 = vpow.pop %v1666
    %v1668 = vmul.f32 %v1657, 1.442695
    %v1669 = vpow.pop %v1668
    %v1670 = vmul.f32 %v1658, 1.442695
    %v1671 = vpow.pop %v1670
    %v1672 = vmul.f32 %v1659, 1.442695
    %v1673 = vpow.pop %v1672
    %v1674 = vmul.f32 %v1660, 1.442695
    %v1675 = vpow.pop %v1674
    %v1676 = vmul.f32 %v1661, 1.442695
    %v1677 = vpow.pop %v1676
    %v1678 = vsel %vm276, %v1663, 0.0
    %1679 = vadd.xlane.f32.xlu0 %v1678
    %v1680 = vpop.xlane.xlu0 %1679
    %v1681 = vsel %vm276, %v1665, 0.0
    %1682 = vadd.xlane.f32.xlu0 %v1681
    %v1683 = vpop.xlane.xlu0 %1682
    %v1684 = vsel %vm276, %v1667, 0.0
    %1685 = vadd.xlane.f32.xlu0 %v1684
    %v1686 = vpop.xlane.xlu0 %1685
    %v1687 = vsel %vm276, %v1669, 0.0
    %1688 = vadd.xlane.f32.xlu0 %v1687
    %v1689 = vpop.xlane.xlu0 %1688
    %v1690 = vsel %vm276, %v1671, 0.0
    %1691 = vadd.xlane.f32.xlu0 %v1690
    %v1692 = vpop.xlane.xlu0 %1691
    %v1693 = vsel %vm276, %v1673, 0.0
    %1694 = vadd.xlane.f32.xlu0 %v1693
    %v1695 = vpop.xlane.xlu0 %1694
    %v1696 = vsel %vm276, %v1675, 0.0
    %1697 = vadd.xlane.f32.xlu0 %v1696
    %v1698 = vpop.xlane.xlu0 %1697
    %v1699 = vsel %vm276, %v1677, 0.0
    %1700 = vadd.xlane.f32.xlu0 %v1699
    %v1701 = vpop.xlane.xlu0 %1700
    %v1702 = vrcp.pop %v1680
    %v1703 = vrcp.pop %v1683
    %v1704 = vrcp.pop %v1686
    %v1705 = vrcp.pop %v1689
    %v1706 = vrcp.pop %v1692
    %v1707 = vrcp.pop %v1695
    %v1708 = vrcp.pop %v1698
    %v1709 = vrcp.pop %v1701
    %v1710 = vmul.f32 %v1663, %v1702
    %v1711 = vmul.f32 %v1665, %v1703
    %v1712 = vmul.f32 %v1667, %v1704
    %v1713 = vmul.f32 %v1669, %v1705
    %v1714 = vmul.f32 %v1671, %v1706
    %v1715 = vmul.f32 %v1673, %v1707
    %v1716 = vmul.f32 %v1675, %v1708
    %v1717 = vmul.f32 %v1677, %v1709
    %1718 = vrot.lane.b32.xlu0 %v1187, 118
    %v1719 = vpop.permute.xlu0 %1718
    %1720 = vrot.lane.b32.xlu0 %v1190, 118
    %v1721 = vpop.permute.xlu0 %1720
    %1722 = vrot.lane.b32.xlu0 %v1193, 118
    %v1723 = vpop.permute.xlu0 %1722
    %1724 = vrot.lane.b32.xlu0 %v1196, 118
    %v1725 = vpop.permute.xlu0 %1724
    %1726 = vrot.lane.b32.xlu0 %v1199, 118
    %v1727 = vpop.permute.xlu0 %1726
    %1728 = vrot.lane.b32.xlu0 %v1202, 118
    %v1729 = vpop.permute.xlu0 %1728
    %1730 = vrot.lane.b32.xlu0 %v1205, 118
    %v1731 = vpop.permute.xlu0 %1730
    %1732 = vrot.lane.b32.xlu0 %v1208, 118
    %v1733 = vpop.permute.xlu0 %1732
    %v1743 = vsel %vm276, %v1710, 0
    %v1746 = vsel %vm276, %v1711, 0
    %v1749 = vsel %vm276, %v1712, 0
    %v1752 = vsel %vm276, %v1713, 0
    %v1755 = vsel %vm276, %v1714, 0
    %v1758 = vsel %vm276, %v1715, 0
    %v1761 = vsel %vm276, %v1716, 0
    %v1764 = vsel %vm276, %v1717, 0
    %1766 = vmatpush.msra.mxu0 0.0
    %1767 = vmatpush.msra.mxu0 0.0
    %1768 = vmatpush.msra.mxu0 0.0
    %1769 = vmatpush.msra.mxu0 0.0
    %1770 = vmatpush.msra.mxu0 0.0
    %1771 = vmatpush.msra.mxu0 0.0
    %1772 = vmatpush.msra.mxu0 0.0
    %1773 = vmatpush.msra.mxu0 0.0
    %1774 = vmatpush.msra.mxu0 %v1733
    %1775 = vmatpush.msra.mxu0 %v1731
    %1776 = vmatpush.msra.mxu0 %v1729
    %1777 = vmatpush.msra.mxu0 %v1727
    %1778 = vmatpush.msra.mxu0 %v1725
    %1779 = vmatpush.msra.mxu0 %v1723
    %1780 = vmatpush.msra.mxu0 %v1721
    %1781 = vmatpush.msra.mxu0 %v1719
    %1782 = vmatmul.f32.gmra.mxu0 %v1743
    %v1783 = vpop.f32.mrf.mxu0
    %v1784 = vadd.f32 0.0, %v1783
    %1785 = vmatmul.f32.gmra.mxu0 %v1746
    %v1786 = vpop.f32.mrf.mxu0
    %v1787 = vadd.f32 0.0, %v1786
    %1788 = vmatmul.f32.gmra.mxu0 %v1749
    %v1789 = vpop.f32.mrf.mxu0
    %v1790 = vadd.f32 0.0, %v1789
    %1791 = vmatmul.f32.gmra.mxu0 %v1752
    %v1792 = vpop.f32.mrf.mxu0
    %v1793 = vadd.f32 0.0, %v1792
    %1794 = vmatmul.f32.gmra.mxu0 %v1755
    %v1795 = vpop.f32.mrf.mxu0
    %v1796 = vadd.f32 0.0, %v1795
    %1797 = vmatmul.f32.gmra.mxu0 %v1758
    %v1798 = vpop.f32.mrf.mxu0
    %v1799 = vadd.f32 0.0, %v1798
    %1800 = vmatmul.f32.gmra.mxu0 %v1761
    %v1801 = vpop.f32.mrf.mxu0
    %v1802 = vadd.f32 0.0, %v1801
    %1803 = vmatmul.f32.gmra.mxu0 %v1764
    %v1804 = vpop.f32.mrf.mxu0
    %v1805 = vadd.f32 0.0, %v1804
    %1806 = vdwg.mxu0
    %1815 = vrot.lane.b32.xlu0 %v1784, 2
    %v1816 = vpop.permute.xlu0 %1815
    %1817 = vrot.lane.b32.xlu0 %v1787, 2
    %v1818 = vpop.permute.xlu0 %1817
    %1819 = vrot.lane.b32.xlu0 %v1790, 2
    %v1820 = vpop.permute.xlu0 %1819
    %1821 = vrot.lane.b32.xlu0 %v1793, 2
    %v1822 = vpop.permute.xlu0 %1821
    %1823 = vrot.lane.b32.xlu0 %v1796, 2
    %v1824 = vpop.permute.xlu0 %1823
    %1825 = vrot.lane.b32.xlu0 %v1799, 2
    %v1826 = vpop.permute.xlu0 %1825
    %1827 = vrot.lane.b32.xlu0 %v1802, 2
    %v1828 = vpop.permute.xlu0 %1827
    %1829 = vrot.lane.b32.xlu0 %v1805, 2
    %v1830 = vpop.permute.xlu0 %1829
    %v1839 = vsel %vm1242, %v1486, %v1816
    %v1840 = vsel %vm1242, %v1489, %v1818
    %v1841 = vsel %vm1242, %v1492, %v1820
    %v1842 = vsel %vm1242, %v1495, %v1822
    %v1843 = vsel %vm1242, %v1498, %v1824
    %v1844 = vsel %vm1242, %v1501, %v1826
    %v1845 = vsel %vm1242, %v1504, %v1828
    %v1846 = vsel %vm1242, %v1507, %v1830
    %1847 = vrot.lane.b32.xlu0 %v849, 112
    %v1848 = vpop.permute.xlu0 %1847
    %v1850 = vsel %vm32, %v1839, 0
    %v1853 = vsel %vm32, %v1840, 0
    %v1856 = vsel %vm32, %v1841, 0
    %v1859 = vsel %vm32, %v1842, 0
    %v1862 = vsel %vm32, %v1843, 0
    %v1865 = vsel %vm32, %v1844, 0
    %v1868 = vsel %vm32, %v1845, 0
    %v1871 = vsel %vm32, %v1846, 0
    %v1873 = vsel %vm101, %v1848, 0
    %1875 = vmatpush.msra.mxu0 0.0
    %1876 = vmatpush.msra.mxu0 0.0
    %1877 = vmatpush.msra.mxu0 0.0
    %1878 = vmatpush.msra.mxu0 0.0
    %1879 = vmatpush.msra.mxu0 0.0
    %1880 = vmatpush.msra.mxu0 0.0
    %1881 = vmatpush.msra.mxu0 0.0
    %1882 = vmatpush.msra.mxu0 0.0
    %1883 = vmatpush.msra.mxu0 0.0
    %1884 = vmatpush.msra.mxu0 0.0
    %1885 = vmatpush.msra.mxu0 0.0
    %1886 = vmatpush.msra.mxu0 0.0
    %1887 = vmatpush.msra.mxu0 0.0
    %1888 = vmatpush.msra.mxu0 0.0
    %1889 = vmatpush.msra.mxu0 0.0
    %1890 = vmatpush.msra.mxu0 %v1873
    %1891 = vmatmul.f32.gmra.mxu0 %v1850
    %v1892 = vpop.f32.mrf.mxu0
    %v1893 = vadd.f32 0.0, %v1892
    %1894 = vmatmul.f32.gmra.mxu0 %v1853
    %v1895 = vpop.f32.mrf.mxu0
    %v1896 = vadd.f32 0.0, %v1895
    %1897 = vmatmul.f32.gmra.mxu0 %v1856
    %v1898 = vpop.f32.mrf.mxu0
    %v1899 = vadd.f32 0.0, %v1898
    %1900 = vmatmul.f32.gmra.mxu0 %v1859
    %v1901 = vpop.f32.mrf.mxu0
    %v1902 = vadd.f32 0.0, %v1901
    %1903 = vmatmul.f32.gmra.mxu0 %v1862
    %v1904 = vpop.f32.mrf.mxu0
    %v1905 = vadd.f32 0.0, %v1904
    %1906 = vmatmul.f32.gmra.mxu0 %v1865
    %v1907 = vpop.f32.mrf.mxu0
    %v1908 = vadd.f32 0.0, %v1907
    %1909 = vmatmul.f32.gmra.mxu0 %v1868
    %v1910 = vpop.f32.mrf.mxu0
    %v1911 = vadd.f32 0.0, %v1910
    %1912 = vmatmul.f32.gmra.mxu0 %v1871
    %v1913 = vpop.f32.mrf.mxu0
    %v1914 = vadd.f32 0.0, %v1913
    %1915 = vdwg.mxu0
    %v1916 = vadd.f32 %v913, %v1893
    %v1917 = vadd.f32 %v916, %v1896
    %v1918 = vadd.f32 %v919, %v1899
    %v1919 = vadd.f32 %v922, %v1902
    %v1920 = vadd.f32 %v925, %v1905
    %v1921 = vadd.f32 %v928, %v1908
    %v1922 = vadd.f32 %v931, %v1911
    %v1923 = vadd.f32 %v934, %v1914
    %v1924 = vld [vmem:[#allocation2 + $0x47] sm:$0x1]
    %v1925 = vperm.slane %v1924, 0
    %v1926 = vadd.f32 %v1916, %v1925
    %v1927 = vadd.f32 %v1917, %v1925
    %v1928 = vadd.f32 %v1918, %v1925
    %v1929 = vadd.f32 %v1919, %v1925
    %v1930 = vadd.f32 %v1920, %v1925
    %v1931 = vadd.f32 %v1921, %v1925
    %v1932 = vadd.f32 %v1922, %v1925
    %v1933 = vadd.f32 %v1923, %v1925
    %v1934 = vld [vmem:[#allocation2 + $0x50] sm:$0xf]
    %v1936 = vsel %vm32, %v1926, 0
    %v1939 = vsel %vm32, %v1927, 0
    %v1942 = vsel %vm32, %v1928, 0
    %v1945 = vsel %vm32, %v1929, 0
    %v1948 = vsel %vm32, %v1930, 0
    %v1951 = vsel %vm32, %v1931, 0
    %v1954 = vsel %vm32, %v1932, 0
    %v1957 = vsel %vm32, %v1933, 0
    %v1960 = vsel %vm101, %v1934, 0
    %1962 = vmatpush.msra.mxu0 0.0
    %1963 = vmatpush.msra.mxu0 0.0
    %1964 = vmatpush.msra.mxu0 0.0
    %1965 = vmatpush.msra.mxu0 0.0
    %1966 = vmatpush.msra.mxu0 0.0
    %1967 = vmatpush.msra.mxu0 0.0
    %1968 = vmatpush.msra.mxu0 0.0
    %1969 = vmatpush.msra.mxu0 0.0
    %1970 = vmatpush.msra.mxu0 0.0
    %1971 = vmatpush.msra.mxu0 0.0
    %1972 = vmatpush.msra.mxu0 0.0
    %1973 = vmatpush.msra.mxu0 0.0
    %1974 = vmatpush.msra.mxu0 0.0
    %1975 = vmatpush.msra.mxu0 0.0
    %1976 = vmatpush.msra.mxu0 0.0
    %1977 = vmatpush.msra.mxu0 %v1960
    %1978 = vmatmul.f32.gmra.mxu0 %v1936
    %v1979 = vpop.f32.mrf.mxu0
    %v1980 = vadd.f32 0.0, %v1979
    %1981 = vmatmul.f32.gmra.mxu0 %v1939
    %v1982 = vpop.f32.mrf.mxu0
    %v1983 = vadd.f32 0.0, %v1982
    %1984 = vmatmul.f32.gmra.mxu0 %v1942
    %v1985 = vpop.f32.mrf.mxu0
    %v1986 = vadd.f32 0.0, %v1985
    %1987 = vmatmul.f32.gmra.mxu0 %v1945
    %v1988 = vpop.f32.mrf.mxu0
    %v1989 = vadd.f32 0.0, %v1988
    %1990 = vmatmul.f32.gmra.mxu0 %v1948
    %v1991 = vpop.f32.mrf.mxu0
    %v1992 = vadd.f32 0.0, %v1991
    %1993 = vmatmul.f32.gmra.mxu0 %v1951
    %v1994 = vpop.f32.mrf.mxu0
    %v1995 = vadd.f32 0.0, %v1994
    %1996 = vmatmul.f32.gmra.mxu0 %v1954
    %v1997 = vpop.f32.mrf.mxu0
    %v1998 = vadd.f32 0.0, %v1997
    %1999 = vmatmul.f32.gmra.mxu0 %v1957
    %v2000 = vpop.f32.mrf.mxu0
    %v2001 = vadd.f32 0.0, %v2000
    %2002 = vdwg.mxu0
    %v2003 = vld [vmem:[#allocation2 + $0x118] sm:$0xff]
    %v2004 = vld [vmem:[#allocation2 + $0x120] sm:$0xff]
    %v2005 = vld [vmem:[#allocation2 + $0x128] sm:$0xff]
    %v2006 = vld [vmem:[#allocation2 + $0x130] sm:$0xff]
    %v2007 = vld [vmem:[#allocation2 + $0x138] sm:$0xff]
    %v2008 = vld [vmem:[#allocation2 + $0x140] sm:$0xff]
    %v2009 = vld [vmem:[#allocation2 + $0x148] sm:$0xff]
    %v2010 = vld [vmem:[#allocation2 + $0x150] sm:$0xff]
    %v2011 = vmul.f32 %v1980, %v2003
    %v2012 = vmul.f32 %v1983, %v2004
    %v2013 = vmul.f32 %v1986, %v2005
    %v2014 = vmul.f32 %v1989, %v2006
    %v2015 = vmul.f32 %v1992, %v2007
    %v2016 = vmul.f32 %v1995, %v2008
    %v2017 = vmul.f32 %v1998, %v2009
    %v2018 = vmul.f32 %v2001, %v2010
    %v2019 = vld [vmem:[#allocation2 + $0x158] sm:$0xff]
    %v2021 = vsel %vm276, %v2019, 0
    %2023 = vmatpush.msra.mxu0 0.0
    %2024 = vmatpush.msra.mxu0 0.0
    %2025 = vmatpush.msra.mxu0 0.0
    %2026 = vmatpush.msra.mxu0 0.0
    %2027 = vmatpush.msra.mxu0 0.0
    %2028 = vmatpush.msra.mxu0 0.0
    %2029 = vmatpush.msra.mxu0 0.0
    %2030 = vmatpush.msra.mxu0 0.0
    %2031 = vmatpush.msra.mxu0 %v2018
    %2032 = vmatpush.msra.mxu0 %v2017
    %2033 = vmatpush.msra.mxu0 %v2016
    %2034 = vmatpush.msra.mxu0 %v2015
    %2035 = vmatpush.msra.mxu0 %v2014
    %2036 = vmatpush.msra.mxu0 %v2013
    %2037 = vmatpush.msra.mxu0 %v2012
    %2038 = vmatpush.msra.mxu0 %v2011
    %2039 = vmatmul.f32.gmra.mxu0 %v2021
    %v2040 = vpop.f32.mrf.mxu0
    %v2041 = vadd.f32 0.0, %v2040
    %2042 = vdwg.mxu0
    %v2043 = vld [vmem:[#allocation2 + $0x160] sm:$0xff]
    %v2044 = vld [vmem:[#allocation2 + $0x168] sm:$0xff]
    %v2045 = vld [vmem:[#allocation2 + $0x170] sm:$0xff]
    %v2046 = vld [vmem:[#allocation2 + $0x178] sm:$0xff]
    %v2047 = vld [vmem:[#allocation2 + $0x180] sm:$0xff]
    %v2048 = vld [vmem:[#allocation2 + $0x188] sm:$0xff]
    %v2049 = vld [vmem:[#allocation2 + $0x190] sm:$0xff]
    %v2050 = vld [vmem:[#allocation2 + $0x198] sm:$0xff]
    %v2051 = vld [vmem:[#allocation2 + $0x1a0] sm:$0xff]
    %v2052 = vld [vmem:[#allocation2 + $0x1a8] sm:$0xff]
    %v2053 = vld [vmem:[#allocation2 + $0x1b0] sm:$0xff]
    %v2054 = vld [vmem:[#allocation2 + $0x1b8] sm:$0xff]
    %v2055 = vld [vmem:[#allocation2 + $0x1c0] sm:$0xff]
    %v2056 = vld [vmem:[#allocation2 + $0x1c8] sm:$0xff]
    %v2057 = vld [vmem:[#allocation2 + $0x1d0] sm:$0xff]
    %v2058 = vld [vmem:[#allocation2 + $0x1d8] sm:$0xff]
    %v2059 = vld [vmem:[#allocation2 + $0x48] sm:$0x1]
    %v2060 = vperm.slane %v2059, 0
    %2061 = vmatpush.msra.mxu0 %v2058
    %2062 = vmatpush.msra.mxu0 %v2057
    %2063 = vmatpush.msra.mxu0 %v2056
    %2064 = vmatpush.msra.mxu0 %v2055
    %2065 = vmatpush.msra.mxu0 %v2054
    %2066 = vmatpush.msra.mxu0 %v2053
    %2067 = vmatpush.msra.mxu0 %v2052
    %2068 = vmatpush.msra.mxu0 %v2051
    %2069 = vmatpush.msra.mxu0 %v2050
    %2070 = vmatpush.msra.mxu0 %v2049
    %2071 = vmatpush.msra.mxu0 %v2048
    %2072 = vmatpush.msra.mxu0 %v2047
    %2073 = vmatpush.msra.mxu0 %v2046
    %2074 = vmatpush.msra.mxu0 %v2045
    %2075 = vmatpush.msra.mxu0 %v2044
    %2076 = vmatpush.msra.mxu0 %v2043
    %2077 = vmatmul.f32.gmra.mxu0 %v2041
    %v2078 = vpop.f32.mrf.mxu0
    %v2079 = vadd.f32 %v2060, %v2078
    %2080 = vdwg.mxu0
    %v2081 = vmul.f32 %v2079, 0.5
    %v2082 = vmul.f32 %v2079, 0.70710677
    %v2083 = vmul.f32 %v2082, %v2082
    %v2084 = vmin.f32 16.0, %v2083
    %v2085 = vmul.f32 %v2084, 2.1237322e-06
    %v2086 = vadd.f32 %v2085, 0.00028619796
    %v2087 = vmul.f32 %v2084, %v2086
    %v2088 = vadd.f32 %v2087, 0.0036580483
    %v2089 = vmul.f32 %v2084, %v2088
    %v2090 = vadd.f32 %v2089, 0.05243302
    %v2091 = vmul.f32 %v2084, %v2090
    %v2092 = vadd.f32 %v2091, 0.18741608
    %v2093 = vmul.f32 %v2084, %v2092
    %v2094 = vadd.f32 %v2093, 1.1283791
    %v2095 = vmul.f32 %v2082, %v2094
    %v2096 = vmul.f32 %v2084, 3.8918573e-05
    %v2097 = vadd.f32 %v2096, 0.001143296
    %v2098 = vmul.f32 %v2084, %v2097
    %v2099 = vadd.f32 %v2098, 0.014752088
    %v2100 = vmul.f32 %v2084, %v2099
    %v2101 = vadd.f32 %v2100, 0.112945676
    %v2102 = vmul.f32 %v2084, %v2101
    %v2103 = vadd.f32 %v2102, 0.4994258
    %v2104 = vmul.f32 %v2084, %v2103
    %v2105 = vadd.f32 %v2104, 1.0
    %v2106 = vrcp.pop %v2105
    %v2107 = vmul.f32 %v2105, %v2106
    %v2108 = vsub.f32 1.0, %v2107
    %v2109 = vmul.f32 %v2106, %v2108
    %v2110 = vadd.f32 %v2106, %v2109
    %vm2111 = vweird.f32 %v2105
    %vm2112 = vweird.f32 %v2106
    %vm2113 = vmor %vm2111, %vm2112
    %v2114 = vsel %vm2113, %v2106, %v2110
    %v2115 = vand.u32 2147483647, %v2105
    %vm2116 = vcmp.eq.f32.partialorder %v2115, 8.507059e+37
    %v2117 = vand.u32 %v2105, 2147483648
    %v2118 = vor.u32 1.1754944e-38, %v2117
    %v2119 = vsel %vm2116, %v2118, %v2114
    %v2120 = vmul.f32 %v2095, %v2119
    %v2121 = vmin.f32 %v2120, 1.0
    %v2122 = vmax.f32 %v2121, -1.0
    %v2123 = vadd.f32 %v2122, 1.0
    %v2124 = vmul.f32 %v2081, %v2123
    %v2125 = vld [vmem:[#allocation2 + $0x20] sm:$0xff]
    %v2126 = vld [vmem:[#allocation2 + $0x28] sm:$0xff]
    %v2127 = vld [vmem:[#allocation2 + $0x49] sm:$0x1]
    %v2128 = vperm.slane %v2127, 0
    %vm2129 = vcmask 130048
    %v2131 = vsel %vm2129, %v2124, 0
    %2133 = vmatpush.msra.mxu0 0.0
    %2134 = vmatpush.msra.mxu0 0.0
    %2135 = vmatpush.msra.mxu0 0.0
    %2136 = vmatpush.msra.mxu0 0.0
    %2137 = vmatpush.msra.mxu0 0.0
    %2138 = vmatpush.msra.mxu0 0.0
    %2139 = vmatpush.msra.mxu0 0.0
    %2140 = vmatpush.msra.mxu0 0.0
    %2141 = vmatpush.msra.mxu0 0.0
    %2142 = vmatpush.msra.mxu0 0.0
    %2143 = vmatpush.msra.mxu0 0.0
    %2144 = vmatpush.msra.mxu0 0.0
    %2145 = vmatpush.msra.mxu0 0.0
    %2146 = vmatpush.msra.mxu0 0.0
    %2147 = vmatpush.msra.mxu0 %v2126
    %2148 = vmatpush.msra.mxu0 %v2125
    %2149 = vmatmul.f32.gmra.mxu0 %v2131
    %v2150 = vpop.f32.mrf.mxu0
    %v2151 = vadd.f32 %v2128, %v2150
    %2152 = vdwg.mxu0
    %v2153 = vadd.f32 %v172, %v2151
    %v2154 = vsub.f32 %v2153, %v143
    %2155 = vset.pattern.permute.xlu0 2
    %2156 = vperm.xlu0 %2155, %v103
    %v2157 = vpop.permute.xlu0 %2156
    %v2159 = vmul.f32 %v2154, %v2157
    %v2160 = vmul.f32 %v2159, %v133
    %v2161 = vadd.f32 %v2160, %v115
    %v2163 = vsel %vm202, %v28, 0
    %v2166 = vsel %vm202, %v2161, 0
    %2168 = vmatpush.xpose.msra.mxu0 0.0
    %2169 = vmatpush.xpose.msra.mxu0 0.0
    %2170 = vmatpush.xpose.msra.mxu0 0.0
    %2171 = vmatpush.xpose.msra.mxu0 0.0
    %2172 = vmatpush.xpose.msra.mxu0 0.0
    %2173 = vmatpush.xpose.msra.mxu0 0.0
    %2174 = vmatpush.xpose.msra.mxu0 0.0
    %2175 = vmatpush.xpose.msra.mxu0 0.0
    %2176 = vmatpush.xpose.msra.mxu0 0.0
    %2177 = vmatpush.xpose.msra.mxu0 0.0
    %2178 = vmatpush.xpose.msra.mxu0 0.0
    %2179 = vmatpush.xpose.msra.mxu0 0.0
    %2180 = vmatpush.xpose.msra.mxu0 0.0
    %2181 = vmatpush.xpose.msra.mxu0 0.0
    %2182 = vmatpush.xpose.msra.mxu0 0.0
    %2183 = vmatpush.xpose.msra.mxu0 %v2166
    %2184 = vmatmul.f32.gmra.mxu0 %v2163
    %v2185 = vpop.f32.mrf.mxu0
    %v2186 = vadd.f32 0.0, %v2185
    %2187 = vdwg.mxu0
    %2188 = vst.msk [vmem:[%s2] sm:$0xff] %vm32, %v2186
    %v2189 = vrot.slane %v2161, 4
    %v2190 = vsel %vm202, %v2189, 0
    %2192 = vmatpush.xpose.msra.mxu0 0.0
    %2193 = vmatpush.xpose.msra.mxu0 0.0
    %2194 = vmatpush.xpose.msra.mxu0 0.0
    %2195 = vmatpush.xpose.msra.mxu0 0.0
    %2196 = vmatpush.xpose.msra.mxu0 0.0
    %2197 = vmatpush.xpose.msra.mxu0 0.0
    %2198 = vmatpush.xpose.msra.mxu0 0.0
    %2199 = vmatpush.xpose.msra.mxu0 0.0
    %2200 = vmatpush.xpose.msra.mxu0 0.0
    %2201 = vmatpush.xpose.msra.mxu0 0.0
    %2202 = vmatpush.xpose.msra.mxu0 0.0
    %2203 = vmatpush.xpose.msra.mxu0 0.0
    %2204 = vmatpush.xpose.msra.mxu0 0.0
    %2205 = vmatpush.xpose.msra.mxu0 0.0
    %2206 = vmatpush.xpose.msra.mxu0 0.0
    %2207 = vmatpush.xpose.msra.mxu0 %v2190
    %2208 = vmatmul.f32.gmra.mxu0 %v2163
    %v2209 = vpop.f32.mrf.mxu0
    %v2210 = vadd.f32 0.0, %v2209
    %2211 = vdwg.mxu0
    %s2212 = scalar_lea.vmem %s2, 8
    %2213 = vst.msk [vmem:[%s2212] sm:$0xff] %vm32, %v2210
    // Predicated region
    $region14: #{model_forward.1} parent=1 // pred_check
      _
    $region15: #{model_forward.1} parent=1 // pred_check_branch
      %2215 = sbr.rel (0) target = $region17
    $region16: #{model_forward.1} parent=1 // pred_region
      _
    $region17: #{model_forward.1} parent=1 // pred_fallthru
      _
    // Predicated region
    $region18: #{model_forward.1} parent=1 // pred_check
      _
    $region19: #{model_forward.1} parent=1 // pred_check_branch
      %2217 = sbr.rel (0) target = $region21
    $region20: #{model_forward.1} parent=1 // pred_region
      _
    $region21: #{model_forward.1} parent=1 // pred_fallthru
      _
    %2218 = vsyncpa [#allocation3], 1

</llo_original>
